<compile_context>
chip_gen: v7x
topology: tpu7x:2x2x1
jax: 0.10.0
libtpu: 0.0.40
codegen_flags: <defaults>
</compile_context>

<pallas_src>
import math

import jax
import jax.numpy as jnp
from jax import lax
from jax.experimental import pallas as pl
from jax.experimental.pallas import tpu as pltpu

# ---------------- model dims (small, consistent with BertLayer) ---------------
B = 2          # batch
S = 8          # sequence length
H = 32         # hidden_size
N_HEADS = 4    # num_attention_heads
D_HEAD = H // N_HEADS
I = 64         # intermediate_size
N_LAYERS = 4   # Benchmark builds 4 deep-copies of the same BertLayer
BS = B * S
NEG_BIG = -1e9  # cross-batch block penalty (exp underflows to exactly 0 in f32)


def _layer_norm(x, gamma, beta, eps=1e-12):
    # BertLayerNorm: biased variance over last dim.
    u = jnp.mean(x, axis=-1, keepdims=True)
    s = jnp.mean((x - u) ** 2, axis=-1, keepdims=True)
    return (x - u) * lax.rsqrt(s + eps) * gamma + beta


def _gelu(x):
    # exact erf-based gelu, as in the reference gelu()
    return x * 0.5 * (1.0 + lax.erf(x * (1.0 / math.sqrt(2.0))))


def benchmark_kernel(h_ref, m_ref,
                     wqkv_ref, bqkv_ref,
                     wo_ref, bo_ref, g1_ref, be1_ref,
                     wi_ref, bi_ref, w2_ref, b2_ref, g2_ref, be2_ref,
                     out_ref, h_scr):
    """Whole Benchmark forward; grid axis 0 = layer index (sequential)."""
    # Layer 0: load the input activations into the VMEM-resident hidden state.
    @pl.when(pl.program_id(0) == 0)
    def _():
        h_scr[...] = h_ref[...]

    x = h_scr[...]                                   # (B*S, H)
    mfull = m_ref[...]                               # (B*S, B*S) additive mask

    # --- BertSelfAttention: fused Q|K|V projection (one MXU push + one bias add)
    qkv = jnp.dot(x, wqkv_ref[...], preferred_element_type=jnp.float32) + bqkv_ref[...]
    q = qkv[:, 0:H]                                  # 1/sqrt(d) folded into W_q/b_q
    k = qkv[:, H:2 * H]
    v = qkv[:, 2 * H:3 * H]

    wo = wo_ref[...]
    # static head loop (N_HEADS=4); both batches are processed together — the
    # precomputed mask kills cross-batch attention — and the per-head output
    # projection is folded so no head-concat is ever materialized.
    attn = jnp.zeros((BS, H), jnp.float32)
    for h in range(N_HEADS):
        cols = slice(h * D_HEAD, (h + 1) * D_HEAD)
        qh = q[:, cols]                              # (B*S, D_HEAD)
        kh = k[:, cols]
        vh = v[:, cols]
        sc = jnp.dot(qh, kh.T, preferred_element_type=jnp.float32) + mfull
        sc = sc - jnp.max(sc, axis=-1, keepdims=True)
        e = jnp.exp(sc)
        # softmax denom via EUP reciprocal (approx) instead of VPU divide
        p = e * pl.reciprocal(jnp.sum(e, axis=-1, keepdims=True), approx=True)
        # dropout(attention_probs): eval-mode identity
        ctx = jnp.dot(p, vh, preferred_element_type=jnp.float32)        # (B*S, D_HEAD)
        attn = attn + jnp.dot(ctx, wo[cols, :], preferred_element_type=jnp.float32)

    # --- BertSelfOutput: dense bias + residual + LayerNorm
    attn = attn + bo_ref[...]
    y1 = _layer_norm(attn + x, g1_ref[...], be1_ref[...])

    # --- BertIntermediate: dense + gelu
    inter = _gelu(jnp.dot(y1, wi_ref[...], preferred_element_type=jnp.float32)
                  + bi_ref[...])

    # --- BertOutput: dense + residual + LayerNorm
    out = jnp.dot(inter, w2_ref[...], preferred_element_type=jnp.float32) + b2_ref[...]
    y2 = _layer_norm(out + y1, g2_ref[...], be2_ref[...])

    h_scr[...] = y2                                  # carry to next layer
    out_ref[0] = y2                                  # per-layer encoded output


_CONST2 = lambda l: (0, 0)   # untiled 2-D operand, resident across the layer grid


@jax.jit
def _benchmark_call(hidden, mask, params):
    """hidden: (B, S, H) f32, mask: (B, 1, 1, S) additive f32, params: raw tuple."""
    (wq, bq, wk, bk, wv, bv, wo, bo, g1, be1,
     wi, bi, w2, b2, g2, be2) = params
    scale = 1.0 / math.sqrt(D_HEAD)
    wqkv = jnp.concatenate([wq * scale, wk, wv], axis=1)     # (H, 3H), scale folded
    bqkv = jnp.concatenate([bq * scale, bk, bv], axis=1)     # (1, 3H)

    h2 = hidden.reshape(BS, H).astype(jnp.float32)
    m2 = mask.reshape(B, S).astype(jnp.float32)

    # Combined (B*S, B*S) additive mask: attention mask inside each batch block,
    # NEG_BIG outside (kills cross-batch attention in the batched score matmul).
    col_b = jnp.arange(BS) // S
    col_j = jnp.arange(BS) % S
    mask_cols = m2[col_b, col_j]                              # (B*S,)
    same_batch = col_b[:, None] == col_b[None, :]             # (B*S, B*S)
    mfull = jnp.where(same_batch, mask_cols[None, :], NEG_BIG).astype(jnp.float32)

    weights = (wqkv, bqkv, wo, bo, g1, be1, wi, bi, w2, b2, g2, be2)

    in_specs = ([pl.BlockSpec((BS, H), _CONST2),     # hidden (read at layer 0)
                 pl.BlockSpec((BS, BS), _CONST2)]    # combined additive mask
                + [pl.BlockSpec(w.shape, _CONST2) for w in weights])

    out = pl.pallas_call(
        benchmark_kernel,
        out_shape=jax.ShapeDtypeStruct((N_LAYERS, BS, H), jnp.float32),
        grid_spec=pltpu.PrefetchScalarGridSpec(
            num_scalar_prefetch=0,
            grid=(N_LAYERS,),
            in_specs=in_specs,
            out_specs=pl.BlockSpec((1, BS, H), lambda l: (l, 0, 0)),
            scratch_shapes=[pltpu.VMEM((BS, H), jnp.float32)],  # carried hidden state
        ),
        compiler_params=pltpu.CompilerParams(
            dimension_semantics=("arbitrary",)),     # layers are sequential
    )(h2, mfull, *weights)
    return out.reshape(N_LAYERS, B, S, H)


def benchmark_forward(hidden, mask, params, output_all_encoded_layers=True):
    """Benchmark.forward: 4 identical BertLayers, fused into one pallas_call."""
    outs = _benchmark_call(hidden, mask, params)
    if output_all_encoded_layers:
        return [outs[i] for i in range(N_LAYERS)]
    return [outs[N_LAYERS - 1]]


def init_params(key):
    """Deterministic BertLayer parameters. Linear weights stored pre-transposed
    to (in_features, out_features); biases/LN params stored as (1, N) rows."""
    ks = jax.random.split(key, 6)
    std = 0.02
    wq = jax.random.normal(ks[0], (H, H), jnp.float32) * std
    wk = jax.random.normal(ks[1], (H, H), jnp.float32) * std
    wv = jax.random.normal(ks[2], (H, H), jnp.float32) * std
    wo = jax.random.normal(ks[3], (H, H), jnp.float32) * std
    wi = jax.random.normal(ks[4], (H, I), jnp.float32) * std
    w2 = jax.random.normal(ks[5], (I, H), jnp.float32) * std
    zH = jnp.zeros((1, H), jnp.float32)
    zI = jnp.zeros((1, I), jnp.float32)
    oH = jnp.ones((1, H), jnp.float32)
    return (wq, zH, wk, zH, wv, zH,
            wo, zH, oH, zH,          # attention-output dense + LayerNorm(gamma, beta)
            wi, zI, w2, zH, oH, zH)  # intermediate dense, output dense + LayerNorm


# ------------------------- pure-JAX reference (sanity check) -------------------
def _ref_layer(x, mask, p):
    (wq, bq, wk, bk, wv, bv, wo, bo, g1, be1, wi, bi, w2, b2, g2, be2) = p
    q = x @ wq + bq
    k = x @ wk + bk
    v = x @ wv + bv
    qh = q.reshape(B, S, N_HEADS, D_HEAD).transpose(0, 2, 1, 3)
    kh = k.reshape(B, S, N_HEADS, D_HEAD).transpose(0, 2, 1, 3)
    vh = v.reshape(B, S, N_HEADS, D_HEAD).transpose(0, 2, 1, 3)
    sc = jnp.einsum('bhqd,bhkd->bhqk', qh, kh) / math.sqrt(D_HEAD) + mask
    pr = jax.nn.softmax(sc, axis=-1)
    ctx = jnp.einsum('bhqk,bhkd->bhqd', pr, vh).transpose(0, 2, 1, 3).reshape(B, S, H)
    y1 = _layer_norm(ctx @ wo + bo + x, g1, be1)
    it = _gelu(y1 @ wi + bi)
    return _layer_norm(it @ w2 + b2 + y1, g2, be2)


if __name__ == "__main__":
    key = jax.random.PRNGKey(0)
    k_h, k_m, k_p = jax.random.split(key, 3)

    hidden = jax.random.normal(k_h, (B, S, H), jnp.float32)
    # additive attention mask: 0 where attended, -10000 where masked
    keep = (jax.random.uniform(k_m, (B, 1, 1, S)) > 0.2).astype(jnp.float32)
    mask = (1.0 - keep) * -10000.0

    params = init_params(k_p)

    outs = benchmark_forward(hidden, mask, params, output_all_encoded_layers=True)
    outs = [jax.block_until_ready(o) for o in outs]

    # sanity check against a pure-JAX reference of the same math
    # (tolerance loosened slightly for the EUP approx-reciprocal in softmax)
    ref = hidden
    for i in range(N_LAYERS):
        ref = _ref_layer(ref, mask, params)
        assert jnp.allclose(outs[i], ref, atol=1e-3, rtol=1e-3), f"layer {i} mismatch"

    print("KERNEL_OK")
</pallas_src>

<mosaic_0001>
module attributes {stable_mosaic.version = 11 : i64} {
  func.func @benchmark_kernel(%arg0: i32, %arg1: memref<16x32xf32, #tpu.memory_space<vmem>>, %arg2: memref<16x16xf32, #tpu.memory_space<vmem>>, %arg3: memref<32x96xf32, #tpu.memory_space<vmem>>, %arg4: memref<1x96xf32, #tpu.memory_space<vmem>>, %arg5: memref<32x32xf32, #tpu.memory_space<vmem>>, %arg6: memref<1x32xf32, #tpu.memory_space<vmem>>, %arg7: memref<1x32xf32, #tpu.memory_space<vmem>>, %arg8: memref<1x32xf32, #tpu.memory_space<vmem>>, %arg9: memref<32x64xf32, #tpu.memory_space<vmem>>, %arg10: memref<1x64xf32, #tpu.memory_space<vmem>>, %arg11: memref<64x32xf32, #tpu.memory_space<vmem>>, %arg12: memref<1x32xf32, #tpu.memory_space<vmem>>, %arg13: memref<1x32xf32, #tpu.memory_space<vmem>>, %arg14: memref<1x32xf32, #tpu.memory_space<vmem>>, %arg15: memref<1x16x32xf32, #tpu.memory_space<vmem>>, %arg16: memref<16x32xf32, #tpu.memory_space<vmem>>) attributes {dimension_semantics = [#tpu.dimension_semantics<arbitrary>], iteration_bounds = array<i64: 4>, scalar_prefetch = 0 : i64, scratch_operands = 1 : i64, tpu.core_type = #tpu.core_type<tc>, window_params = [{pipeline_mode = #tpu.pipeline_mode<synchronous>, transform_indices = @transform_0, window_bounds = array<i64: 16, 32>}, {pipeline_mode = #tpu.pipeline_mode<synchronous>, transform_indices = @transform_1, window_bounds = array<i64: 16, 16>}, {pipeline_mode = #tpu.pipeline_mode<synchronous>, transform_indices = @transform_2, window_bounds = array<i64: 32, 96>}, {pipeline_mode = #tpu.pipeline_mode<synchronous>, transform_indices = @transform_3, window_bounds = array<i64: 1, 96>}, {pipeline_mode = #tpu.pipeline_mode<synchronous>, transform_indices = @transform_4, window_bounds = array<i64: 32, 32>}, {pipeline_mode = #tpu.pipeline_mode<synchronous>, transform_indices = @transform_5, window_bounds = array<i64: 1, 32>}, {pipeline_mode = #tpu.pipeline_mode<synchronous>, transform_indices = @transform_6, window_bounds = array<i64: 1, 32>}, {pipeline_mode = #tpu.pipeline_mode<synchronous>, transform_indices = @transform_7, window_bounds = array<i64: 1, 32>}, {pipeline_mode = #tpu.pipeline_mode<synchronous>, transform_indices = @transform_8, window_bounds = array<i64: 32, 64>}, {pipeline_mode = #tpu.pipeline_mode<synchronous>, transform_indices = @transform_9, window_bounds = array<i64: 1, 64>}, {pipeline_mode = #tpu.pipeline_mode<synchronous>, transform_indices = @transform_10, window_bounds = array<i64: 64, 32>}, {pipeline_mode = #tpu.pipeline_mode<synchronous>, transform_indices = @transform_11, window_bounds = array<i64: 1, 32>}, {pipeline_mode = #tpu.pipeline_mode<synchronous>, transform_indices = @transform_12, window_bounds = array<i64: 1, 32>}, {pipeline_mode = #tpu.pipeline_mode<synchronous>, transform_indices = @transform_13, window_bounds = array<i64: 1, 32>}, {transform_indices = @transform_14, window_bounds = array<i64: 1, 16, 32>}]} {
    %c0_i32 = arith.constant 0 : i32
    %0 = arith.cmpi eq, %arg0, %c0_i32 : i32
    %1 = arith.extui %0 : i1 to i32
    %c0_i32_0 = arith.constant 0 : i32
    %2 = arith.cmpi ne, %1, %c0_i32_0 : i32
    scf.if %2 {
      %c0_69 = arith.constant 0 : index
      %c0_70 = arith.constant 0 : index
      %170 = vector.load %arg1[%c0_69, %c0_70] : memref<16x32xf32, #tpu.memory_space<vmem>>, vector<16x32xf32>
      %c0_71 = arith.constant 0 : index
      %c0_72 = arith.constant 0 : index
      %171 = vector.load %arg16[%c0_71, %c0_72] : memref<16x32xf32, #tpu.memory_space<vmem>>, vector<16x32xf32>
      tpu.vector_store %arg16[%c0_71, %c0_72], %170 {strides = array<i32>} : memref<16x32xf32, #tpu.memory_space<vmem>>, vector<16x32xf32>,
    } else {
    }
    %c0 = arith.constant 0 : index
    %c0_1 = arith.constant 0 : index
    %3 = vector.load %arg16[%c0, %c0_1] : memref<16x32xf32, #tpu.memory_space<vmem>>, vector<16x32xf32>
    %c0_2 = arith.constant 0 : index
    %c0_3 = arith.constant 0 : index
    %4 = vector.load %arg2[%c0_2, %c0_3] : memref<16x16xf32, #tpu.memory_space<vmem>>, vector<16x16xf32>
    %c0_4 = arith.constant 0 : index
    %c0_5 = arith.constant 0 : index
    %5 = vector.load %arg3[%c0_4, %c0_5] : memref<32x96xf32, #tpu.memory_space<vmem>>, vector<32x96xf32>
    %cst = arith.constant dense<0.000000e+00> : vector<16x96xf32>
    %6 = tpu.matmul %3, %5, %cst {dimension_numbers = #tpu.dot_dimension_numbers<[1], [0], [0], [1], [0, 0, 1, 1], [], []>} : vector<16x32xf32>, vector<32x96xf32>, vector<16x96xf32> -> vector<16x96xf32>
    %c0_6 = arith.constant 0 : index
    %c0_7 = arith.constant 0 : index
    %7 = vector.load %arg4[%c0_6, %c0_7] : memref<1x96xf32, #tpu.memory_space<vmem>>, vector<1x96xf32>
    %8 = vector.broadcast %7 : vector<1x96xf32> to vector<16x96xf32>
    %9 = arith.addf %6, %8 : vector<16x96xf32>
    %10 = vector.extract_strided_slice %9 {offsets = [0, 0], sizes = [16, 32], strides = [1, 1]} : vector<16x96xf32> to vector<16x32xf32>
    %11 = vector.extract_strided_slice %9 {offsets = [0, 32], sizes = [16, 32], strides = [1, 1]} : vector<16x96xf32> to vector<16x32xf32>
    %12 = vector.extract_strided_slice %9 {offsets = [0, 64], sizes = [16, 32], strides = [1, 1]} : vector<16x96xf32> to vector<16x32xf32>
    %c0_8 = arith.constant 0 : index
    %c0_9 = arith.constant 0 : index
    %13 = vector.load %arg5[%c0_8, %c0_9] : memref<32x32xf32, #tpu.memory_space<vmem>>, vector<32x32xf32>
    %cst_10 = arith.constant 0.000000e+00 : f32
    %14 = vector.broadcast %cst_10 : f32 to vector<16x32xf32>
    %15 = vector.extract_strided_slice %10 {offsets = [0, 0], sizes = [16, 8], strides = [1, 1]} : vector<16x32xf32> to vector<16x8xf32>
    %16 = vector.extract_strided_slice %11 {offsets = [0, 0], sizes = [16, 8], strides = [1, 1]} : vector<16x32xf32> to vector<16x8xf32>
    %17 = vector.extract_strided_slice %12 {offsets = [0, 0], sizes = [16, 8], strides = [1, 1]} : vector<16x32xf32> to vector<16x8xf32>
    %18 = tpu.transpose %16, [1, 0] : vector<16x8xf32> -> vector<8x16xf32>
    %cst_11 = arith.constant dense<0.000000e+00> : vector<16x16xf32>
    %19 = tpu.matmul %15, %18, %cst_11 {dimension_numbers = #tpu.dot_dimension_numbers<[1], [0], [0], [1], [0, 0, 1, 1], [], []>} : vector<16x8xf32>, vector<8x16xf32>, vector<16x16xf32> -> vector<16x16xf32>
    %20 = arith.addf %19, %4 : vector<16x16xf32>
    %cst_12 = arith.constant dense<0xFF800000> : vector<16xf32>
    %21 = vector.multi_reduction <maximumf>, %20, %cst_12 [1] : vector<16x16xf32> to vector<16xf32>
    %22 = vector.shape_cast %21 : vector<16xf32> to vector<16x1xf32>
    %23 = vector.broadcast %22 : vector<16x1xf32> to vector<16x16xf32>
    %24 = arith.subf %20, %23 : vector<16x16xf32>
    %25 = math.exp %24 : vector<16x16xf32>
    %cst_13 = arith.constant dense<0.000000e+00> : vector<16xf32>
    %26 = vector.multi_reduction <add>, %25, %cst_13 [1] : vector<16x16xf32> to vector<16xf32>
    %27 = vector.shape_cast %26 : vector<16xf32> to vector<16x1xf32>
    %28 = tpu.reciprocal %27 {approx = true} : vector<16x1xf32> -> vector<16x1xf32>
    %29 = vector.broadcast %28 : vector<16x1xf32> to vector<16x16xf32>
    %30 = arith.mulf %25, %29 : vector<16x16xf32>
    %cst_14 = arith.constant dense<0.000000e+00> : vector<16x8xf32>
    %31 = tpu.matmul %30, %17, %cst_14 {dimension_numbers = #tpu.dot_dimension_numbers<[1], [0], [0], [1], [0, 0, 1, 1], [], []>} : vector<16x16xf32>, vector<16x8xf32>, vector<16x8xf32> -> vector<16x8xf32>
    %32 = vector.extract_strided_slice %13 {offsets = [0, 0], sizes = [8, 32], strides = [1, 1]} : vector<32x32xf32> to vector<8x32xf32>
    %cst_15 = arith.constant dense<0.000000e+00> : vector<16x32xf32>
    %33 = tpu.matmul %31, %32, %cst_15 {dimension_numbers = #tpu.dot_dimension_numbers<[1], [0], [0], [1], [0, 0, 1, 1], [], []>} : vector<16x8xf32>, vector<8x32xf32>, vector<16x32xf32> -> vector<16x32xf32>
    %34 = arith.addf %14, %33 : vector<16x32xf32>
    %35 = vector.extract_strided_slice %10 {offsets = [0, 8], sizes = [16, 8], strides = [1, 1]} : vector<16x32xf32> to vector<16x8xf32>
    %36 = vector.extract_strided_slice %11 {offsets = [0, 8], sizes = [16, 8], strides = [1, 1]} : vector<16x32xf32> to vector<16x8xf32>
    %37 = vector.extract_strided_slice %12 {offsets = [0, 8], sizes = [16, 8], strides = [1, 1]} : vector<16x32xf32> to vector<16x8xf32>
    %38 = tpu.transpose %36, [1, 0] : vector<16x8xf32> -> vector<8x16xf32>
    %cst_16 = arith.constant dense<0.000000e+00> : vector<16x16xf32>
    %39 = tpu.matmul %35, %38, %cst_16 {dimension_numbers = #tpu.dot_dimension_numbers<[1], [0], [0], [1], [0, 0, 1, 1], [], []>} : vector<16x8xf32>, vector<8x16xf32>, vector<16x16xf32> -> vector<16x16xf32>
    %40 = arith.addf %39, %4 : vector<16x16xf32>
    %cst_17 = arith.constant dense<0xFF800000> : vector<16xf32>
    %41 = vector.multi_reduction <maximumf>, %40, %cst_17 [1] : vector<16x16xf32> to vector<16xf32>
    %42 = vector.shape_cast %41 : vector<16xf32> to vector<16x1xf32>
    %43 = vector.broadcast %42 : vector<16x1xf32> to vector<16x16xf32>
    %44 = arith.subf %40, %43 : vector<16x16xf32>
    %45 = math.exp %44 : vector<16x16xf32>
    %cst_18 = arith.constant dense<0.000000e+00> : vector<16xf32>
    %46 = vector.multi_reduction <add>, %45, %cst_18 [1] : vector<16x16xf32> to vector<16xf32>
    %47 = vector.shape_cast %46 : vector<16xf32> to vector<16x1xf32>
    %48 = tpu.reciprocal %47 {approx = true} : vector<16x1xf32> -> vector<16x1xf32>
    %49 = vector.broadcast %48 : vector<16x1xf32> to vector<16x16xf32>
    %50 = arith.mulf %45, %49 : vector<16x16xf32>
    %cst_19 = arith.constant dense<0.000000e+00> : vector<16x8xf32>
    %51 = tpu.matmul %50, %37, %cst_19 {dimension_numbers = #tpu.dot_dimension_numbers<[1], [0], [0], [1], [0, 0, 1, 1], [], []>} : vector<16x16xf32>, vector<16x8xf32>, vector<16x8xf32> -> vector<16x8xf32>
    %52 = vector.extract_strided_slice %13 {offsets = [8, 0], sizes = [8, 32], strides = [1, 1]} : vector<32x32xf32> to vector<8x32xf32>
    %cst_20 = arith.constant dense<0.000000e+00> : vector<16x32xf32>
    %53 = tpu.matmul %51, %52, %cst_20 {dimension_numbers = #tpu.dot_dimension_numbers<[1], [0], [0], [1], [0, 0, 1, 1], [], []>} : vector<16x8xf32>, vector<8x32xf32>, vector<16x32xf32> -> vector<16x32xf32>
    %54 = arith.addf %34, %53 : vector<16x32xf32>
    %55 = vector.extract_strided_slice %10 {offsets = [0, 16], sizes = [16, 8], strides = [1, 1]} : vector<16x32xf32> to vector<16x8xf32>
    %56 = vector.extract_strided_slice %11 {offsets = [0, 16], sizes = [16, 8], strides = [1, 1]} : vector<16x32xf32> to vector<16x8xf32>
    %57 = vector.extract_strided_slice %12 {offsets = [0, 16], sizes = [16, 8], strides = [1, 1]} : vector<16x32xf32> to vector<16x8xf32>
    %58 = tpu.transpose %56, [1, 0] : vector<16x8xf32> -> vector<8x16xf32>
    %cst_21 = arith.constant dense<0.000000e+00> : vector<16x16xf32>
    %59 = tpu.matmul %55, %58, %cst_21 {dimension_numbers = #tpu.dot_dimension_numbers<[1], [0], [0], [1], [0, 0, 1, 1], [], []>} : vector<16x8xf32>, vector<8x16xf32>, vector<16x16xf32> -> vector<16x16xf32>
    %60 = arith.addf %59, %4 : vector<16x16xf32>
    %cst_22 = arith.constant dense<0xFF800000> : vector<16xf32>
    %61 = vector.multi_reduction <maximumf>, %60, %cst_22 [1] : vector<16x16xf32> to vector<16xf32>
    %62 = vector.shape_cast %61 : vector<16xf32> to vector<16x1xf32>
    %63 = vector.broadcast %62 : vector<16x1xf32> to vector<16x16xf32>
    %64 = arith.subf %60, %63 : vector<16x16xf32>
    %65 = math.exp %64 : vector<16x16xf32>
    %cst_23 = arith.constant dense<0.000000e+00> : vector<16xf32>
    %66 = vector.multi_reduction <add>, %65, %cst_23 [1] : vector<16x16xf32> to vector<16xf32>
    %67 = vector.shape_cast %66 : vector<16xf32> to vector<16x1xf32>
    %68 = tpu.reciprocal %67 {approx = true} : vector<16x1xf32> -> vector<16x1xf32>
    %69 = vector.broadcast %68 : vector<16x1xf32> to vector<16x16xf32>
    %70 = arith.mulf %65, %69 : vector<16x16xf32>
    %cst_24 = arith.constant dense<0.000000e+00> : vector<16x8xf32>
    %71 = tpu.matmul %70, %57, %cst_24 {dimension_numbers = #tpu.dot_dimension_numbers<[1], [0], [0], [1], [0, 0, 1, 1], [], []>} : vector<16x16xf32>, vector<16x8xf32>, vector<16x8xf32> -> vector<16x8xf32>
    %72 = vector.extract_strided_slice %13 {offsets = [16, 0], sizes = [8, 32], strides = [1, 1]} : vector<32x32xf32> to vector<8x32xf32>
    %cst_25 = arith.constant dense<0.000000e+00> : vector<16x32xf32>
    %73 = tpu.matmul %71, %72, %cst_25 {dimension_numbers = #tpu.dot_dimension_numbers<[1], [0], [0], [1], [0, 0, 1, 1], [], []>} : vector<16x8xf32>, vector<8x32xf32>, vector<16x32xf32> -> vector<16x32xf32>
    %74 = arith.addf %54, %73 : vector<16x32xf32>
    %75 = vector.extract_strided_slice %10 {offsets = [0, 24], sizes = [16, 8], strides = [1, 1]} : vector<16x32xf32> to vector<16x8xf32>
    %76 = vector.extract_strided_slice %11 {offsets = [0, 24], sizes = [16, 8], strides = [1, 1]} : vector<16x32xf32> to vector<16x8xf32>
    %77 = vector.extract_strided_slice %12 {offsets = [0, 24], sizes = [16, 8], strides = [1, 1]} : vector<16x32xf32> to vector<16x8xf32>
    %78 = tpu.transpose %76, [1, 0] : vector<16x8xf32> -> vector<8x16xf32>
    %cst_26 = arith.constant dense<0.000000e+00> : vector<16x16xf32>
    %79 = tpu.matmul %75, %78, %cst_26 {dimension_numbers = #tpu.dot_dimension_numbers<[1], [0], [0], [1], [0, 0, 1, 1], [], []>} : vector<16x8xf32>, vector<8x16xf32>, vector<16x16xf32> -> vector<16x16xf32>
    %80 = arith.addf %79, %4 : vector<16x16xf32>
    %cst_27 = arith.constant dense<0xFF800000> : vector<16xf32>
    %81 = vector.multi_reduction <maximumf>, %80, %cst_27 [1] : vector<16x16xf32> to vector<16xf32>
    %82 = vector.shape_cast %81 : vector<16xf32> to vector<16x1xf32>
    %83 = vector.broadcast %82 : vector<16x1xf32> to vector<16x16xf32>
    %84 = arith.subf %80, %83 : vector<16x16xf32>
    %85 = math.exp %84 : vector<16x16xf32>
    %cst_28 = arith.constant dense<0.000000e+00> : vector<16xf32>
    %86 = vector.multi_reduction <add>, %85, %cst_28 [1] : vector<16x16xf32> to vector<16xf32>
    %87 = vector.shape_cast %86 : vector<16xf32> to vector<16x1xf32>
    %88 = tpu.reciprocal %87 {approx = true} : vector<16x1xf32> -> vector<16x1xf32>
    %89 = vector.broadcast %88 : vector<16x1xf32> to vector<16x16xf32>
    %90 = arith.mulf %85, %89 : vector<16x16xf32>
    %cst_29 = arith.constant dense<0.000000e+00> : vector<16x8xf32>
    %91 = tpu.matmul %90, %77, %cst_29 {dimension_numbers = #tpu.dot_dimension_numbers<[1], [0], [0], [1], [0, 0, 1, 1], [], []>} : vector<16x16xf32>, vector<16x8xf32>, vector<16x8xf32> -> vector<16x8xf32>
    %92 = vector.extract_strided_slice %13 {offsets = [24, 0], sizes = [8, 32], strides = [1, 1]} : vector<32x32xf32> to vector<8x32xf32>
    %cst_30 = arith.constant dense<0.000000e+00> : vector<16x32xf32>
    %93 = tpu.matmul %91, %92, %cst_30 {dimension_numbers = #tpu.dot_dimension_numbers<[1], [0], [0], [1], [0, 0, 1, 1], [], []>} : vector<16x8xf32>, vector<8x32xf32>, vector<16x32xf32> -> vector<16x32xf32>
    %94 = arith.addf %74, %93 : vector<16x32xf32>
    %c0_31 = arith.constant 0 : index
    %c0_32 = arith.constant 0 : index
    %95 = vector.load %arg6[%c0_31, %c0_32] : memref<1x32xf32, #tpu.memory_space<vmem>>, vector<1x32xf32>
    %96 = vector.broadcast %95 : vector<1x32xf32> to vector<16x32xf32>
    %97 = arith.addf %94, %96 : vector<16x32xf32>
    %98 = arith.addf %97, %3 : vector<16x32xf32>
    %c0_33 = arith.constant 0 : index
    %c0_34 = arith.constant 0 : index
    %99 = vector.load %arg7[%c0_33, %c0_34] : memref<1x32xf32, #tpu.memory_space<vmem>>, vector<1x32xf32>
    %c0_35 = arith.constant 0 : index
    %c0_36 = arith.constant 0 : index
    %100 = vector.load %arg8[%c0_35, %c0_36] : memref<1x32xf32, #tpu.memory_space<vmem>>, vector<1x32xf32>
    %cst_37 = arith.constant dense<0.000000e+00> : vector<16xf32>
    %101 = vector.multi_reduction <add>, %98, %cst_37 [1] : vector<16x32xf32> to vector<16xf32>
    %102 = vector.shape_cast %101 : vector<16xf32> to vector<16x1xf32>
    %cst_38 = arith.constant 3.200000e+01 : f32
    %103 = vector.broadcast %cst_38 : f32 to vector<16x1xf32>
    %104 = arith.divf %102, %103 : vector<16x1xf32>
    %105 = vector.broadcast %104 : vector<16x1xf32> to vector<16x32xf32>
    %106 = arith.subf %98, %105 : vector<16x32xf32>
    %107 = arith.mulf %106, %106 : vector<16x32xf32>
    %cst_39 = arith.constant dense<0.000000e+00> : vector<16xf32>
    %108 = vector.multi_reduction <add>, %107, %cst_39 [1] : vector<16x32xf32> to vector<16xf32>
    %109 = vector.shape_cast %108 : vector<16xf32> to vector<16x1xf32>
    %cst_40 = arith.constant 3.200000e+01 : f32
    %110 = vector.broadcast %cst_40 : f32 to vector<16x1xf32>
    %111 = arith.divf %109, %110 : vector<16x1xf32>
    %112 = vector.broadcast %104 : vector<16x1xf32> to vector<16x32xf32>
    %113 = arith.subf %98, %112 : vector<16x32xf32>
    %cst_41 = arith.constant 9.99999996E-13 : f32
    %114 = vector.broadcast %cst_41 : f32 to vector<16x1xf32>
    %115 = arith.addf %111, %114 : vector<16x1xf32>
    %116 = math.rsqrt %115 : vector<16x1xf32>
    %117 = vector.broadcast %116 : vector<16x1xf32> to vector<16x32xf32>
    %118 = arith.mulf %113, %117 : vector<16x32xf32>
    %119 = vector.broadcast %99 : vector<1x32xf32> to vector<16x32xf32>
    %120 = arith.mulf %118, %119 : vector<16x32xf32>
    %121 = vector.broadcast %100 : vector<1x32xf32> to vector<16x32xf32>
    %122 = arith.addf %120, %121 : vector<16x32xf32>
    %c0_42 = arith.constant 0 : index
    %c0_43 = arith.constant 0 : index
    %123 = vector.load %arg9[%c0_42, %c0_43] : memref<32x64xf32, #tpu.memory_space<vmem>>, vector<32x64xf32>
    %cst_44 = arith.constant dense<0.000000e+00> : vector<16x64xf32>
    %124 = tpu.matmul %122, %123, %cst_44 {dimension_numbers = #tpu.dot_dimension_numbers<[1], [0], [0], [1], [0, 0, 1, 1], [], []>} : vector<16x32xf32>, vector<32x64xf32>, vector<16x64xf32> -> vector<16x64xf32>
    %c0_45 = arith.constant 0 : index
    %c0_46 = arith.constant 0 : index
    %125 = vector.load %arg10[%c0_45, %c0_46] : memref<1x64xf32, #tpu.memory_space<vmem>>, vector<1x64xf32>
    %126 = vector.broadcast %125 : vector<1x64xf32> to vector<16x64xf32>
    %127 = arith.addf %124, %126 : vector<16x64xf32>
    %cst_47 = arith.constant 5.000000e-01 : f32
    %128 = vector.broadcast %cst_47 : f32 to vector<16x64xf32>
    %129 = arith.mulf %127, %128 : vector<16x64xf32>
    %cst_48 = arith.constant 0.707106769 : f32
    %130 = vector.broadcast %cst_48 : f32 to vector<16x64xf32>
    %131 = arith.mulf %127, %130 : vector<16x64xf32>
    %132 = math.erf %131 : vector<16x64xf32>
    %cst_49 = arith.constant 1.000000e+00 : f32
    %133 = vector.broadcast %cst_49 : f32 to vector<16x64xf32>
    %134 = arith.addf %133, %132 : vector<16x64xf32>
    %135 = arith.mulf %129, %134 : vector<16x64xf32>
    %c0_50 = arith.constant 0 : index
    %c0_51 = arith.constant 0 : index
    %136 = vector.load %arg11[%c0_50, %c0_51] : memref<64x32xf32, #tpu.memory_space<vmem>>, vector<64x32xf32>
    %cst_52 = arith.constant dense<0.000000e+00> : vector<16x32xf32>
    %137 = tpu.matmul %135, %136, %cst_52 {dimension_numbers = #tpu.dot_dimension_numbers<[1], [0], [0], [1], [0, 0, 1, 1], [], []>} : vector<16x64xf32>, vector<64x32xf32>, vector<16x32xf32> -> vector<16x32xf32>
    %c0_53 = arith.constant 0 : index
    %c0_54 = arith.constant 0 : index
    %138 = vector.load %arg12[%c0_53, %c0_54] : memref<1x32xf32, #tpu.memory_space<vmem>>, vector<1x32xf32>
    %139 = vector.broadcast %138 : vector<1x32xf32> to vector<16x32xf32>
    %140 = arith.addf %137, %139 : vector<16x32xf32>
    %141 = arith.addf %140, %122 : vector<16x32xf32>
    %c0_55 = arith.constant 0 : index
    %c0_56 = arith.constant 0 : index
    %142 = vector.load %arg13[%c0_55, %c0_56] : memref<1x32xf32, #tpu.memory_space<vmem>>, vector<1x32xf32>
    %c0_57 = arith.constant 0 : index
    %c0_58 = arith.constant 0 : index
    %143 = vector.load %arg14[%c0_57, %c0_58] : memref<1x32xf32, #tpu.memory_space<vmem>>, vector<1x32xf32>
    %cst_59 = arith.constant dense<0.000000e+00> : vector<16xf32>
    %144 = vector.multi_reduction <add>, %141, %cst_59 [1] : vector<16x32xf32> to vector<16xf32>
    %145 = vector.shape_cast %144 : vector<16xf32> to vector<16x1xf32>
    %cst_60 = arith.constant 3.200000e+01 : f32
    %146 = vector.broadcast %cst_60 : f32 to vector<16x1xf32>
    %147 = arith.divf %145, %146 : vector<16x1xf32>
    %148 = vector.broadcast %147 : vector<16x1xf32> to vector<16x32xf32>
    %149 = arith.subf %141, %148 : vector<16x32xf32>
    %150 = arith.mulf %149, %149 : vector<16x32xf32>
    %cst_61 = arith.constant dense<0.000000e+00> : vector<16xf32>
    %151 = vector.multi_reduction <add>, %150, %cst_61 [1] : vector<16x32xf32> to vector<16xf32>
    %152 = vector.shape_cast %151 : vector<16xf32> to vector<16x1xf32>
    %cst_62 = arith.constant 3.200000e+01 : f32
    %153 = vector.broadcast %cst_62 : f32 to vector<16x1xf32>
    %154 = arith.divf %152, %153 : vector<16x1xf32>
    %155 = vector.broadcast %147 : vector<16x1xf32> to vector<16x32xf32>
    %156 = arith.subf %141, %155 : vector<16x32xf32>
    %cst_63 = arith.constant 9.99999996E-13 : f32
    %157 = vector.broadcast %cst_63 : f32 to vector<16x1xf32>
    %158 = arith.addf %154, %157 : vector<16x1xf32>
    %159 = math.rsqrt %158 : vector<16x1xf32>
    %160 = vector.broadcast %159 : vector<16x1xf32> to vector<16x32xf32>
    %161 = arith.mulf %156, %160 : vector<16x32xf32>
    %162 = vector.broadcast %142 : vector<1x32xf32> to vector<16x32xf32>
    %163 = arith.mulf %161, %162 : vector<16x32xf32>
    %164 = vector.broadcast %143 : vector<1x32xf32> to vector<16x32xf32>
    %165 = arith.addf %163, %164 : vector<16x32xf32>
    %c0_64 = arith.constant 0 : index
    %c0_65 = arith.constant 0 : index
    %166 = vector.load %arg16[%c0_64, %c0_65] : memref<16x32xf32, #tpu.memory_space<vmem>>, vector<16x32xf32>
    tpu.vector_store %arg16[%c0_64, %c0_65], %165 {strides = array<i32>} : memref<16x32xf32, #tpu.memory_space<vmem>>, vector<16x32xf32>,
    %c0_66 = arith.constant 0 : index
    %c0_67 = arith.constant 0 : index
    %c0_68 = arith.constant 0 : index
    %167 = vector.load %arg15[%c0_66, %c0_67, %c0_68] : memref<1x16x32xf32, #tpu.memory_space<vmem>>, vector<1x16x32xf32>
    %168 = vector.shape_cast %167 : vector<1x16x32xf32> to vector<16x32xf32>
    %169 = vector.shape_cast %165 : vector<16x32xf32> to vector<1x16x32xf32>
    tpu.vector_store %arg15[%c0_66, %c0_67, %c0_68], %169 {strides = array<i32>} : memref<1x16x32xf32, #tpu.memory_space<vmem>>, vector<1x16x32xf32>,
    return
  }
  func.func @transform_0(%arg0: i32) -> (i32, i32) {
    %c0_i32 = arith.constant 0 : i32
    %c0_i32_0 = arith.constant 0 : i32
    %c0_i32_1 = arith.constant 0 : i32
    return %c0_i32, %c0_i32_0 : i32, i32
  }
  func.func @transform_1(%arg0: i32) -> (i32, i32) {
    %c0_i32 = arith.constant 0 : i32
    %c0_i32_0 = arith.constant 0 : i32
    %c0_i32_1 = arith.constant 0 : i32
    return %c0_i32, %c0_i32_0 : i32, i32
  }
  func.func @transform_2(%arg0: i32) -> (i32, i32) {
    %c0_i32 = arith.constant 0 : i32
    %c0_i32_0 = arith.constant 0 : i32
    %c0_i32_1 = arith.constant 0 : i32
    return %c0_i32, %c0_i32_0 : i32, i32
  }
  func.func @transform_3(%arg0: i32) -> (i32, i32) {
    %c0_i32 = arith.constant 0 : i32
    %c0_i32_0 = arith.constant 0 : i32
    %c0_i32_1 = arith.constant 0 : i32
    return %c0_i32, %c0_i32_0 : i32, i32
  }
  func.func @transform_4(%arg0: i32) -> (i32, i32) {
    %c0_i32 = arith.constant 0 : i32
    %c0_i32_0 = arith.constant 0 : i32
    %c0_i32_1 = arith.constant 0 : i32
    return %c0_i32, %c0_i32_0 : i32, i32
  }
  func.func @transform_5(%arg0: i32) -> (i32, i32) {
    %c0_i32 = arith.constant 0 : i32
    %c0_i32_0 = arith.constant 0 : i32
    %c0_i32_1 = arith.constant 0 : i32
    return %c0_i32, %c0_i32_0 : i32, i32
  }
  func.func @transform_6(%arg0: i32) -> (i32, i32) {
    %c0_i32 = arith.constant 0 : i32
    %c0_i32_0 = arith.constant 0 : i32
    %c0_i32_1 = arith.constant 0 : i32
    return %c0_i32, %c0_i32_0 : i32, i32
  }
  func.func @transform_7(%arg0: i32) -> (i32, i32) {
    %c0_i32 = arith.constant 0 : i32
    %c0_i32_0 = arith.constant 0 : i32
    %c0_i32_1 = arith.constant 0 : i32
    return %c0_i32, %c0_i32_0 : i32, i32
  }
  func.func @transform_8(%arg0: i32) -> (i32, i32) {
    %c0_i32 = arith.constant 0 : i32
    %c0_i32_0 = arith.constant 0 : i32
    %c0_i32_1 = arith.constant 0 : i32
    return %c0_i32, %c0_i32_0 : i32, i32
  }
  func.func @transform_9(%arg0: i32) -> (i32, i32) {
    %c0_i32 = arith.constant 0 : i32
    %c0_i32_0 = arith.constant 0 : i32
    %c0_i32_1 = arith.constant 0 : i32
    return %c0_i32, %c0_i32_0 : i32, i32
  }
  func.func @transform_10(%arg0: i32) -> (i32, i32) {
    %c0_i32 = arith.constant 0 : i32
    %c0_i32_0 = arith.constant 0 : i32
    %c0_i32_1 = arith.constant 0 : i32
    return %c0_i32, %c0_i32_0 : i32, i32
  }
  func.func @transform_11(%arg0: i32) -> (i32, i32) {
    %c0_i32 = arith.constant 0 : i32
    %c0_i32_0 = arith.constant 0 : i32
    %c0_i32_1 = arith.constant 0 : i32
    return %c0_i32, %c0_i32_0 : i32, i32
  }
  func.func @transform_12(%arg0: i32) -> (i32, i32) {
    %c0_i32 = arith.constant 0 : i32
    %c0_i32_0 = arith.constant 0 : i32
    %c0_i32_1 = arith.constant 0 : i32
    return %c0_i32, %c0_i32_0 : i32, i32
  }
  func.func @transform_13(%arg0: i32) -> (i32, i32) {
    %c0_i32 = arith.constant 0 : i32
    %c0_i32_0 = arith.constant 0 : i32
    %c0_i32_1 = arith.constant 0 : i32
    return %c0_i32, %c0_i32_0 : i32, i32
  }
  func.func @transform_14(%arg0: i32) -> (i32, i32, i32) {
    %c0_i32 = arith.constant 0 : i32
    %c0_i32_0 = arith.constant 0 : i32
    %c0_i32_1 = arith.constant 0 : i32
    return %arg0, %c0_i32, %c0_i32_0 : i32, i32, i32
  }
}

</mosaic_0001>

<llo_original>
// kernel: _benchmark_call.1
$region0: #{_benchmark_call.1}
  #allocation0 [shape = 'u32[]', space=smem, size = 0x4, offset = 0x4, fixed_abs, tag = 'smem constant byte address 0x4 - core index']
  #allocation1 [shape = 'u32[144,128]{1,0:T(1,128)}', space=vmem, size = 0x12000, scoped, tag = 'internal scratch']
  #allocation2 [shape = 'f32[16,32]{1,0:T(8,128)}', space=vmem, size = 0x2000, scoped, tag = 'scratch operand']
  %s0 = inlined_call_operand.vmem [shape: f32[16,32], index: 0, kind: input, shape index: {}]
  %s1 = inlined_call_operand.vmem [shape: f32[16,16], index: 1, kind: input, shape index: {}]
  %s2 = inlined_call_operand.vmem [shape: f32[32,96], index: 2, kind: input, shape index: {}]
  %s3 = inlined_call_operand.vmem [shape: f32[1,96], index: 3, kind: input, shape index: {}]
  %s4 = inlined_call_operand.vmem [shape: f32[32,32], index: 4, kind: input, shape index: {}]
  %s5 = inlined_call_operand.vmem [shape: f32[1,32], index: 5, kind: input, shape index: {}]
  %s6 = inlined_call_operand.vmem [shape: f32[1,32], index: 6, kind: input, shape index: {}]
  %s7 = inlined_call_operand.vmem [shape: f32[1,32], index: 7, kind: input, shape index: {}]
  %s8 = inlined_call_operand.vmem [shape: f32[32,64], index: 8, kind: input, shape index: {}]
  %s9 = inlined_call_operand.vmem [shape: f32[1,64], index: 9, kind: input, shape index: {}]
  %s10 = inlined_call_operand.vmem [shape: f32[64,32], index: 10, kind: input, shape index: {}]
  %s11 = inlined_call_operand.vmem [shape: f32[1,32], index: 11, kind: input, shape index: {}]
  %s12 = inlined_call_operand.vmem [shape: f32[1,32], index: 12, kind: input, shape index: {}]
  %s13 = inlined_call_operand.vmem [shape: f32[1,32], index: 13, kind: input, shape index: {}]
  %s14 = inlined_call_operand.hbm [shape: f32[4,16,32], index: 14, kind: output, shape index: {}]
  %s15 = sld [smem:[#allocation0]]
  $region93: #{_benchmark_call.1} parent=0
    _
  %s17 = ssub.s32 1, %s15
  %s18 = scalar_select 0, %s17, %s15
  $region1: #{_benchmark_call.1} parent=0
    #allocation3 [shape = 'u8[16384]{0}', space=vmem, size = 0x4000, scoped, tag = 'output window, operand 0']
    #allocation4 [shape = 's32[2]{0}', space=sflag, size = 0x8, scoped, tag = 'scoped memory for _benchmark_call.1']
    %19 = vsyncpa [#allocation4], 0
    %s20 = scalar_lea.sflag [#allocation4], 1
    %21 = vsyncpa %s20, 0
    loop: start=0, step=1, limit=6
    $region2: #{_benchmark_call.1} parent=1 // loop_pre_header
      _
    $region3: #{_benchmark_call.1} parent=1 // loop_header
      %s23 = sphi 0, %s27
      %p24 = scmp.ge.s32.totalorder %s23, 6
      %s31 = sphi 0, %s31
      %s33 = sphi 0, %s31
      %s34 = sphi 0, %s33
      %s48 = sphi 0, %s34
      %s52 = sphi 0, %s52
      %s54 = sphi 0, %s52
      %s55 = sphi 0, %s54
      %s69 = sphi 0, %s55
      %s73 = sphi 0, %s73
      %s75 = sphi 0, %s73
      %s76 = sphi 0, %s75
      %s90 = sphi 0, %s76
      %s94 = sphi 0, %s94
      %s96 = sphi 0, %s94
      %s97 = sphi 0, %s96
      %s111 = sphi 0, %s97
      %s115 = sphi 0, %s115
      %s117 = sphi 0, %s115
      %s118 = sphi 0, %s117
      %s132 = sphi 0, %s118
      %s136 = sphi 0, %s136
      %s138 = sphi 0, %s136
      %s139 = sphi 0, %s138
      %s153 = sphi 0, %s139
      %s157 = sphi 0, %s157
      %s159 = sphi 0, %s157
      %s160 = sphi 0, %s159
      %s174 = sphi 0, %s160
      %s178 = sphi 0, %s178
      %s180 = sphi 0, %s178
      %s181 = sphi 0, %s180
      %s195 = sphi 0, %s181
      %s199 = sphi 0, %s199
      %s201 = sphi 0, %s199
      %s202 = sphi 0, %s201
      %s216 = sphi 0, %s202
      %s220 = sphi 0, %s220
      %s222 = sphi 0, %s220
      %s223 = sphi 0, %s222
      %s237 = sphi 0, %s223
      %s241 = sphi 0, %s241
      %s243 = sphi 0, %s241
      %s244 = sphi 0, %s243
      %s258 = sphi 0, %s244
      %s262 = sphi 0, %s262
      %s264 = sphi 0, %s262
      %s265 = sphi 0, %s264
      %s279 = sphi 0, %s265
      %s283 = sphi 0, %s283
      %s285 = sphi 0, %s283
      %s286 = sphi 0, %s285
      %s300 = sphi 0, %s286
      %s304 = sphi 0, %s304
      %s306 = sphi 0, %s304
      %s307 = sphi 0, %s306
      %s321 = sphi 0, %s307
      %s327 = sphi 0, %s329
      %s330 = sphi 0, %s327
      %s331 = sphi 0, %s330
      %s347 = sphi 0, %s331
    $region4: #{_benchmark_call.1} parent=1 // loop_header_branch
      %26 = sbr.rel (%p24) target = $region8
    $region5: #{_benchmark_call.1} parent=1 // loop_body
      %s28 = ssub.s32 %s23, 1
      %s29 = ssub.s32 %s23, 2
      %s30 = sadd.s32 %s23, 1
      %s32 = sadd.s32 %s31, 1
      %p35 = scmp.eq.s32.totalorder %s23, 3
      %p36 = scmp.ne.s32.totalorder %s31, %s33
      %p37 = scmp.eq.s32.totalorder %s23, 0
      %p38 = por %p36, %p37
      %p39 = scmp.ne.s32.totalorder %s31, %s33
      %p40 = scmp.eq.s32.totalorder %s28, 3
      %p41 = por %p39, %p40
      %p42 = scmp.ne.s32.totalorder %s33, %s34
      %p43 = scmp.eq.s32.totalorder %s28, 0
      %p44 = por %p42, %p43
      %p45 = scmp.ne.s32.totalorder %s33, %s34
      %p46 = scmp.eq.s32.totalorder %s29, 3
      %p47 = por %p45, %p46
      %p49 = scmp.ne.s32.totalorder %s34, %s48
      %p50 = scmp.eq.s32.totalorder %s29, 0
      %p51 = por %p49, %p50
      %s53 = sadd.s32 %s52, 1
      %p56 = scmp.eq.s32.totalorder %s23, 3
      %p57 = scmp.ne.s32.totalorder %s52, %s54
      %p58 = scmp.eq.s32.totalorder %s23, 0
      %p59 = por %p57, %p58
      %p60 = scmp.ne.s32.totalorder %s52, %s54
      %p61 = scmp.eq.s32.totalorder %s28, 3
      %p62 = por %p60, %p61
      %p63 = scmp.ne.s32.totalorder %s54, %s55
      %p64 = scmp.eq.s32.totalorder %s28, 0
      %p65 = por %p63, %p64
      %p66 = scmp.ne.s32.totalorder %s54, %s55
      %p67 = scmp.eq.s32.totalorder %s29, 3
      %p68 = por %p66, %p67
      %p70 = scmp.ne.s32.totalorder %s55, %s69
      %p71 = scmp.eq.s32.totalorder %s29, 0
      %p72 = por %p70, %p71
      %s74 = sadd.s32 %s73, 1
      %p77 = scmp.eq.s32.totalorder %s23, 3
      %p78 = scmp.ne.s32.totalorder %s73, %s75
      %p79 = scmp.eq.s32.totalorder %s23, 0
      %p80 = por %p78, %p79
      %p81 = scmp.ne.s32.totalorder %s73, %s75
      %p82 = scmp.eq.s32.totalorder %s28, 3
      %p83 = por %p81, %p82
      %p84 = scmp.ne.s32.totalorder %s75, %s76
      %p85 = scmp.eq.s32.totalorder %s28, 0
      %p86 = por %p84, %p85
      %p87 = scmp.ne.s32.totalorder %s75, %s76
      %p88 = scmp.eq.s32.totalorder %s29, 3
      %p89 = por %p87, %p88
      %p91 = scmp.ne.s32.totalorder %s76, %s90
      %p92 = scmp.eq.s32.totalorder %s29, 0
      %p93 = por %p91, %p92
      %s95 = sadd.s32 %s94, 1
      %p98 = scmp.eq.s32.totalorder %s23, 3
      %p99 = scmp.ne.s32.totalorder %s94, %s96
      %p100 = scmp.eq.s32.totalorder %s23, 0
      %p101 = por %p99, %p100
      %p102 = scmp.ne.s32.totalorder %s94, %s96
      %p103 = scmp.eq.s32.totalorder %s28, 3
      %p104 = por %p102, %p103
      %p105 = scmp.ne.s32.totalorder %s96, %s97
      %p106 = scmp.eq.s32.totalorder %s28, 0
      %p107 = por %p105, %p106
      %p108 = scmp.ne.s32.totalorder %s96, %s97
      %p109 = scmp.eq.s32.totalorder %s29, 3
      %p110 = por %p108, %p109
      %p112 = scmp.ne.s32.totalorder %s97, %s111
      %p113 = scmp.eq.s32.totalorder %s29, 0
      %p114 = por %p112, %p113
      %s116 = sadd.s32 %s115, 1
      %p119 = scmp.eq.s32.totalorder %s23, 3
      %p120 = scmp.ne.s32.totalorder %s115, %s117
      %p121 = scmp.eq.s32.totalorder %s23, 0
      %p122 = por %p120, %p121
      %p123 = scmp.ne.s32.totalorder %s115, %s117
      %p124 = scmp.eq.s32.totalorder %s28, 3
      %p125 = por %p123, %p124
      %p126 = scmp.ne.s32.totalorder %s117, %s118
      %p127 = scmp.eq.s32.totalorder %s28, 0
      %p128 = por %p126, %p127
      %p129 = scmp.ne.s32.totalorder %s117, %s118
      %p130 = scmp.eq.s32.totalorder %s29, 3
      %p131 = por %p129, %p130
      %p133 = scmp.ne.s32.totalorder %s118, %s132
      %p134 = scmp.eq.s32.totalorder %s29, 0
      %p135 = por %p133, %p134
      %s137 = sadd.s32 %s136, 1
      %p140 = scmp.eq.s32.totalorder %s23, 3
      %p141 = scmp.ne.s32.totalorder %s136, %s138
      %p142 = scmp.eq.s32.totalorder %s23, 0
      %p143 = por %p141, %p142
      %p144 = scmp.ne.s32.totalorder %s136, %s138
      %p145 = scmp.eq.s32.totalorder %s28, 3
      %p146 = por %p144, %p145
      %p147 = scmp.ne.s32.totalorder %s138, %s139
      %p148 = scmp.eq.s32.totalorder %s28, 0
      %p149 = por %p147, %p148
      %p150 = scmp.ne.s32.totalorder %s138, %s139
      %p151 = scmp.eq.s32.totalorder %s29, 3
      %p152 = por %p150, %p151
      %p154 = scmp.ne.s32.totalorder %s139, %s153
      %p155 = scmp.eq.s32.totalorder %s29, 0
      %p156 = por %p154, %p155
      %s158 = sadd.s32 %s157, 1
      %p161 = scmp.eq.s32.totalorder %s23, 3
      %p162 = scmp.ne.s32.totalorder %s157, %s159
      %p163 = scmp.eq.s32.totalorder %s23, 0
      %p164 = por %p162, %p163
      %p165 = scmp.ne.s32.totalorder %s157, %s159
      %p166 = scmp.eq.s32.totalorder %s28, 3
      %p167 = por %p165, %p166
      %p168 = scmp.ne.s32.totalorder %s159, %s160
      %p169 = scmp.eq.s32.totalorder %s28, 0
      %p170 = por %p168, %p169
      %p171 = scmp.ne.s32.totalorder %s159, %s160
      %p172 = scmp.eq.s32.totalorder %s29, 3
      %p173 = por %p171, %p172
      %p175 = scmp.ne.s32.totalorder %s160, %s174
      %p176 = scmp.eq.s32.totalorder %s29, 0
      %p177 = por %p175, %p176
      %s179 = sadd.s32 %s178, 1
      %p182 = scmp.eq.s32.totalorder %s23, 3
      %p183 = scmp.ne.s32.totalorder %s178, %s180
      %p184 = scmp.eq.s32.totalorder %s23, 0
      %p185 = por %p183, %p184
      %p186 = scmp.ne.s32.totalorder %s178, %s180
      %p187 = scmp.eq.s32.totalorder %s28, 3
      %p188 = por %p186, %p187
      %p189 = scmp.ne.s32.totalorder %s180, %s181
      %p190 = scmp.eq.s32.totalorder %s28, 0
      %p191 = por %p189, %p190
      %p192 = scmp.ne.s32.totalorder %s180, %s181
      %p193 = scmp.eq.s32.totalorder %s29, 3
      %p194 = por %p192, %p193
      %p196 = scmp.ne.s32.totalorder %s181, %s195
      %p197 = scmp.eq.s32.totalorder %s29, 0
      %p198 = por %p196, %p197
      %s200 = sadd.s32 %s199, 1
      %p203 = scmp.eq.s32.totalorder %s23, 3
      %p204 = scmp.ne.s32.totalorder %s199, %s201
      %p205 = scmp.eq.s32.totalorder %s23, 0
      %p206 = por %p204, %p205
      %p207 = scmp.ne.s32.totalorder %s199, %s201
      %p208 = scmp.eq.s32.totalorder %s28, 3
      %p209 = por %p207, %p208
      %p210 = scmp.ne.s32.totalorder %s201, %s202
      %p211 = scmp.eq.s32.totalorder %s28, 0
      %p212 = por %p210, %p211
      %p213 = scmp.ne.s32.totalorder %s201, %s202
      %p214 = scmp.eq.s32.totalorder %s29, 3
      %p215 = por %p213, %p214
      %p217 = scmp.ne.s32.totalorder %s202, %s216
      %p218 = scmp.eq.s32.totalorder %s29, 0
      %p219 = por %p217, %p218
      %s221 = sadd.s32 %s220, 1
      %p224 = scmp.eq.s32.totalorder %s23, 3
      %p225 = scmp.ne.s32.totalorder %s220, %s222
      %p226 = scmp.eq.s32.totalorder %s23, 0
      %p227 = por %p225, %p226
      %p228 = scmp.ne.s32.totalorder %s220, %s222
      %p229 = scmp.eq.s32.totalorder %s28, 3
      %p230 = por %p228, %p229
      %p231 = scmp.ne.s32.totalorder %s222, %s223
      %p232 = scmp.eq.s32.totalorder %s28, 0
      %p233 = por %p231, %p232
      %p234 = scmp.ne.s32.totalorder %s222, %s223
      %p235 = scmp.eq.s32.totalorder %s29, 3
      %p236 = por %p234, %p235
      %p238 = scmp.ne.s32.totalorder %s223, %s237
      %p239 = scmp.eq.s32.totalorder %s29, 0
      %p240 = por %p238, %p239
      %s242 = sadd.s32 %s241, 1
      %p245 = scmp.eq.s32.totalorder %s23, 3
      %p246 = scmp.ne.s32.totalorder %s241, %s243
      %p247 = scmp.eq.s32.totalorder %s23, 0
      %p248 = por %p246, %p247
      %p249 = scmp.ne.s32.totalorder %s241, %s243
      %p250 = scmp.eq.s32.totalorder %s28, 3
      %p251 = por %p249, %p250
      %p252 = scmp.ne.s32.totalorder %s243, %s244
      %p253 = scmp.eq.s32.totalorder %s28, 0
      %p254 = por %p252, %p253
      %p255 = scmp.ne.s32.totalorder %s243, %s244
      %p256 = scmp.eq.s32.totalorder %s29, 3
      %p257 = por %p255, %p256
      %p259 = scmp.ne.s32.totalorder %s244, %s258
      %p260 = scmp.eq.s32.totalorder %s29, 0
      %p261 = por %p259, %p260
      %s263 = sadd.s32 %s262, 1
      %p266 = scmp.eq.s32.totalorder %s23, 3
      %p267 = scmp.ne.s32.totalorder %s262, %s264
      %p268 = scmp.eq.s32.totalorder %s23, 0
      %p269 = por %p267, %p268
      %p270 = scmp.ne.s32.totalorder %s262, %s264
      %p271 = scmp.eq.s32.totalorder %s28, 3
      %p272 = por %p270, %p271
      %p273 = scmp.ne.s32.totalorder %s264, %s265
      %p274 = scmp.eq.s32.totalorder %s28, 0
      %p275 = por %p273, %p274
      %p276 = scmp.ne.s32.totalorder %s264, %s265
      %p277 = scmp.eq.s32.totalorder %s29, 3
      %p278 = por %p276, %p277
      %p280 = scmp.ne.s32.totalorder %s265, %s279
      %p281 = scmp.eq.s32.totalorder %s29, 0
      %p282 = por %p280, %p281
      %s284 = sadd.s32 %s283, 1
      %p287 = scmp.eq.s32.totalorder %s23, 3
      %p288 = scmp.ne.s32.totalorder %s283, %s285
      %p289 = scmp.eq.s32.totalorder %s23, 0
      %p290 = por %p288, %p289
      %p291 = scmp.ne.s32.totalorder %s283, %s285
      %p292 = scmp.eq.s32.totalorder %s28, 3
      %p293 = por %p291, %p292
      %p294 = scmp.ne.s32.totalorder %s285, %s286
      %p295 = scmp.eq.s32.totalorder %s28, 0
      %p296 = por %p294, %p295
      %p297 = scmp.ne.s32.totalorder %s285, %s286
      %p298 = scmp.eq.s32.totalorder %s29, 3
      %p299 = por %p297, %p298
      %p301 = scmp.ne.s32.totalorder %s286, %s300
      %p302 = scmp.eq.s32.totalorder %s29, 0
      %p303 = por %p301, %p302
      %s305 = sadd.s32 %s304, 1
      %p308 = scmp.eq.s32.totalorder %s23, 3
      %p309 = scmp.ne.s32.totalorder %s304, %s306
      %p310 = scmp.eq.s32.totalorder %s23, 0
      %p311 = por %p309, %p310
      %p312 = scmp.ne.s32.totalorder %s304, %s306
      %p313 = scmp.eq.s32.totalorder %s28, 3
      %p314 = por %p312, %p313
      %p315 = scmp.ne.s32.totalorder %s306, %s307
      %p316 = scmp.eq.s32.totalorder %s28, 0
      %p317 = por %p315, %p316
      %p318 = scmp.ne.s32.totalorder %s306, %s307
      %p319 = scmp.eq.s32.totalorder %s29, 3
      %p320 = por %p318, %p319
      %p322 = scmp.ne.s32.totalorder %s307, %s321
      %p323 = scmp.eq.s32.totalorder %s29, 0
      %p324 = por %p322, %p323
      %s325 = ssub.s32 %s23, %s30
      %p326 = scmp.eq.s32.totalorder %s325, 0
      %s328 = sadd.s32 %s327, 1
      %s329 = scalar_select %p326, %s327, %s328
      %p332 = pneg %p326
      %p333 = scmp.eq.s32.totalorder %s23, 3
      %p334 = por %p332, %p333
      %p335 = scmp.ne.s32.totalorder %s327, %s330
      %p336 = scmp.eq.s32.totalorder %s23, 0
      %p337 = por %p335, %p336
      %p338 = scmp.ne.s32.totalorder %s327, %s330
      %p339 = scmp.eq.s32.totalorder %s28, 3
      %p340 = por %p338, %p339
      %p341 = scmp.ne.s32.totalorder %s330, %s331
      %p342 = scmp.eq.s32.totalorder %s28, 0
      %p343 = por %p341, %p342
      %p344 = scmp.ne.s32.totalorder %s330, %s331
      %p345 = scmp.eq.s32.totalorder %s29, 3
      %p346 = por %p344, %p345
      %p348 = scmp.ne.s32.totalorder %s331, %s347
      %p349 = scmp.eq.s32.totalorder %s29, 0
      %p350 = por %p348, %p349
      %p351 = scmp.le.s32.totalorder 1, %s23
      %p352 = scmp.lt.s32.totalorder %s23, 5
      %p353 = pnand %p351, %p352
      %p354 = pneg %p353
      // Predicated region
      $region9: #{_benchmark_call.1} parent=5 // pred_check
        _
      $region10: #{_benchmark_call.1} parent=5 // pred_check_branch
        %356 = sbr.rel (%p353) target = $region12
      $region11: #{_benchmark_call.1} parent=5 // pred_region
        %s357 = ssub.s32 %s23, 1
        // Predicated region
        $region13: #{_benchmark_call.1} parent=11 // pred_check
          %p358 = pneg %p44
        $region14: #{_benchmark_call.1} parent=11 // pred_check_branch
          %360 = sbr.rel (%p358) target = $region16
        $region15: #{_benchmark_call.1} parent=11 // pred_region
          _
        $region16: #{_benchmark_call.1} parent=11 // pred_fallthru
          _
        // Predicated region
        $region17: #{_benchmark_call.1} parent=11 // pred_check
          %p361 = pneg %p65
        $region18: #{_benchmark_call.1} parent=11 // pred_check_branch
          %363 = sbr.rel (%p361) target = $region20
        $region19: #{_benchmark_call.1} parent=11 // pred_region
          _
        $region20: #{_benchmark_call.1} parent=11 // pred_fallthru
          _
        // Predicated region
        $region21: #{_benchmark_call.1} parent=11 // pred_check
          %p364 = pneg %p86
        $region22: #{_benchmark_call.1} parent=11 // pred_check_branch
          %366 = sbr.rel (%p364) target = $region24
        $region23: #{_benchmark_call.1} parent=11 // pred_region
          _
        $region24: #{_benchmark_call.1} parent=11 // pred_fallthru
          _
        // Predicated region
        $region25: #{_benchmark_call.1} parent=11 // pred_check
          %p367 = pneg %p107
        $region26: #{_benchmark_call.1} parent=11 // pred_check_branch
          %369 = sbr.rel (%p367) target = $region28
        $region27: #{_benchmark_call.1} parent=11 // pred_region
          _
        $region28: #{_benchmark_call.1} parent=11 // pred_fallthru
          _
        // Predicated region
        $region29: #{_benchmark_call.1} parent=11 // pred_check
          %p370 = pneg %p128
        $region30: #{_benchmark_call.1} parent=11 // pred_check_branch
          %372 = sbr.rel (%p370) target = $region32
        $region31: #{_benchmark_call.1} parent=11 // pred_region
          _
        $region32: #{_benchmark_call.1} parent=11 // pred_fallthru
          _
        // Predicated region
        $region33: #{_benchmark_call.1} parent=11 // pred_check
          %p373 = pneg %p149
        $region34: #{_benchmark_call.1} parent=11 // pred_check_branch
          %375 = sbr.rel (%p373) target = $region36
        $region35: #{_benchmark_call.1} parent=11 // pred_region
          _
        $region36: #{_benchmark_call.1} parent=11 // pred_fallthru
          _
        // Predicated region
        $region37: #{_benchmark_call.1} parent=11 // pred_check
          %p376 = pneg %p170
        $region38: #{_benchmark_call.1} parent=11 // pred_check_branch
          %378 = sbr.rel (%p376) target = $region40
        $region39: #{_benchmark_call.1} parent=11 // pred_region
          _
        $region40: #{_benchmark_call.1} parent=11 // pred_fallthru
          _
        // Predicated region
        $region41: #{_benchmark_call.1} parent=11 // pred_check
          %p379 = pneg %p191
        $region42: #{_benchmark_call.1} parent=11 // pred_check_branch
          %381 = sbr.rel (%p379) target = $region44
        $region43: #{_benchmark_call.1} parent=11 // pred_region
          _
        $region44: #{_benchmark_call.1} parent=11 // pred_fallthru
          _
        // Predicated region
        $region45: #{_benchmark_call.1} parent=11 // pred_check
          %p382 = pneg %p212
        $region46: #{_benchmark_call.1} parent=11 // pred_check_branch
          %384 = sbr.rel (%p382) target = $region48
        $region47: #{_benchmark_call.1} parent=11 // pred_region
          _
        $region48: #{_benchmark_call.1} parent=11 // pred_fallthru
          _
        // Predicated region
        $region49: #{_benchmark_call.1} parent=11 // pred_check
          %p385 = pneg %p233
        $region50: #{_benchmark_call.1} parent=11 // pred_check_branch
          %387 = sbr.rel (%p385) target = $region52
        $region51: #{_benchmark_call.1} parent=11 // pred_region
          _
        $region52: #{_benchmark_call.1} parent=11 // pred_fallthru
          _
        // Predicated region
        $region53: #{_benchmark_call.1} parent=11 // pred_check
          %p388 = pneg %p254
        $region54: #{_benchmark_call.1} parent=11 // pred_check_branch
          %390 = sbr.rel (%p388) target = $region56
        $region55: #{_benchmark_call.1} parent=11 // pred_region
          _
        $region56: #{_benchmark_call.1} parent=11 // pred_fallthru
          _
        // Predicated region
        $region57: #{_benchmark_call.1} parent=11 // pred_check
          %p391 = pneg %p275
        $region58: #{_benchmark_call.1} parent=11 // pred_check_branch
          %393 = sbr.rel (%p391) target = $region60
        $region59: #{_benchmark_call.1} parent=11 // pred_region
          _
        $region60: #{_benchmark_call.1} parent=11 // pred_fallthru
          _
        // Predicated region
        $region61: #{_benchmark_call.1} parent=11 // pred_check
          %p394 = pneg %p296
        $region62: #{_benchmark_call.1} parent=11 // pred_check_branch
          %396 = sbr.rel (%p394) target = $region64
        $region63: #{_benchmark_call.1} parent=11 // pred_region
          _
        $region64: #{_benchmark_call.1} parent=11 // pred_fallthru
          _
        // Predicated region
        $region65: #{_benchmark_call.1} parent=11 // pred_check
          %p397 = pneg %p317
        $region66: #{_benchmark_call.1} parent=11 // pred_check_branch
          %399 = sbr.rel (%p397) target = $region68
        $region67: #{_benchmark_call.1} parent=11 // pred_region
          _
        $region68: #{_benchmark_call.1} parent=11 // pred_fallthru
          _
      $region12: #{_benchmark_call.1} parent=5 // pred_fallthru
        _
      %p400 = scmp.lt.s32.totalorder %s23, 4
      // Predicated region
      $region69: #{_benchmark_call.1} parent=5 // pred_check
        %p401 = pneg %p400
      $region70: #{_benchmark_call.1} parent=5 // pred_check_branch
        %403 = sbr.rel (%p401) target = $region72
      $region71: #{_benchmark_call.1} parent=5 // pred_region
        _
      $region72: #{_benchmark_call.1} parent=5 // pred_fallthru
        _
      %p404 = scmp.le.s32.totalorder 1, %s23
      %p405 = scmp.lt.s32.totalorder %s23, 5
      %p406 = pnand %p404, %p405
      %p407 = pneg %p406
      // Predicated region
      $region73: #{_benchmark_call.1} parent=5 // pred_check
        _
      $region74: #{_benchmark_call.1} parent=5 // pred_check_branch
        %409 = sbr.rel (%p406) target = $region76
      $region75: #{_benchmark_call.1} parent=5 // pred_region
        %s410 = ssub.s32 %s23, 1
        %p411 = pneg %p44
        %p412 = pneg %p41
        %p413 = pneg %p65
        %p414 = pneg %p62
        %p415 = pneg %p86
        %p416 = pneg %p83
        %p417 = pneg %p107
        %p418 = pneg %p104
        %p419 = pneg %p128
        %p420 = pneg %p125
        %p421 = pneg %p149
        %p422 = pneg %p146
        %p423 = pneg %p170
        %p424 = pneg %p167
        %p425 = pneg %p191
        %p426 = pneg %p188
        %p427 = pneg %p212
        %p428 = pneg %p209
        %p429 = pneg %p233
        %p430 = pneg %p230
        %p431 = pneg %p254
        %p432 = pneg %p251
        %p433 = pneg %p275
        %p434 = pneg %p272
        %p435 = pneg %p296
        %p436 = pneg %p293
        %p437 = pneg %p317
        %p438 = pneg %p314
        %p439 = pneg %p343
        %p440 = pneg %p340
        %s441 = sand.u32 %s330, 1
        %s442 = scalar_lea.sflag [#allocation4], %s441
        %s443 = sand.u32 %s330, 1
        %s444 = smul.addr %s443, 16
        %s445 = scalar_lea.vmem [#allocation3], %s444
        %p446 = scmp.eq.s32.totalorder %s28, 0
        // Predicated region
        $region77: #{_benchmark_call.1} parent=75 // pred_check
          %p447 = pneg %p446
        $region78: #{_benchmark_call.1} parent=75 // pred_check_branch
          %449 = sbr.rel (%p447) target = $region80
        $region79: #{_benchmark_call.1} parent=75 // pred_region
          %v450 = vld [vmem:[%s0] sm:$0xff]
          %v451 = vld [vmem:[%s0 + $0x8] sm:$0xff]
          %vm452 = vcmask 261120
          %453 = vst.msk [vmem:[#allocation2] sm:$0xff] %vm452, %v450
          %454 = vst.msk [vmem:[#allocation2 + $0x8] sm:$0xff] %vm452, %v451
        $region80: #{_benchmark_call.1} parent=75 // pred_fallthru
          _
        %v455 = vld [vmem:[#allocation2] sm:$0xff]
        %v456 = vld [vmem:[#allocation2 + $0x8] sm:$0xff]
        %v457 = vld [vmem:[%s1] sm:$0xff]
        %v458 = vld [vmem:[%s1 + $0x8] sm:$0xff]
        %v459 = vld [vmem:[%s2] sm:$0xff]
        %v460 = vld [vmem:[%s2 + $0x8] sm:$0xff]
        %v461 = vld [vmem:[%s2 + $0x10] sm:$0xff]
        %v462 = vld [vmem:[%s2 + $0x18] sm:$0xff]
        %v463 = vld [vmem:[%s3] sm:$0x1]
        %v465 = vlaneseq
        %v466 = vshrl.u32 %v465, 7
        %v467 = vsub.s32 0, %v466
        %v468 = vrot.slane %v463, %v467
        %vm470 = vcmask 261120
        %v472 = vsel %vm470, %v455, 0
        %v475 = vsel %vm470, %v456, 0
        %477 = vmatprep.subr.mxu0 0.0
        %478 = vmatpush1.msra.mxu0 %v459
        %479 = vmatprep.subr.mxu0 0.0
        %480 = vmatpush1.msra.mxu0 %v460
        %481 = vmatprep.subr.mxu0 0.0
        %482 = vmatpush1.msra.mxu0 %v461
        %483 = vmatprep.subr.mxu0 0.0
        %484 = vmatpush1.msra.mxu0 %v462
        %485 = vmatprep.subr.mxu0 0.0
        %486 = vmatpush1.msra.mxu0 0.0
        %487 = vmatprep.subr.mxu0 0.0
        %488 = vmatpush1.msra.mxu0 0.0
        %489 = vmatprep.subr.mxu0 0.0
        %490 = vmatpush1.msra.mxu0 0.0
        %491 = vmatprep.subr.mxu0 0.0
        %492 = vmatpush1.msra.mxu0 0.0
        %493 = vmatprep.subr.mxu0 0.0
        %494 = vmatpush1.msra.mxu0 0.0
        %495 = vmatprep.subr.mxu0 0.0
        %496 = vmatpush1.msra.mxu0 0.0
        %497 = vmatprep.subr.mxu0 0.0
        %498 = vmatpush1.msra.mxu0 0.0
        %499 = vmatprep.subr.mxu0 0.0
        %500 = vmatpush1.msra.mxu0 0.0
        %501 = vmatprep.subr.mxu0 0.0
        %502 = vmatpush1.msra.mxu0 0.0
        %503 = vmatprep.subr.mxu0 0.0
        %504 = vmatpush1.msra.mxu0 0.0
        %505 = vmatprep.subr.mxu0 0.0
        %506 = vmatpush1.msra.mxu0 0.0
        %507 = vmatprep.subr.mxu0 0.0
        %508 = vmatpush1.msra.mxu0 0.0
        %509 = vmatprep.subr.mxu0 0.0
        %510 = vmatpush1.msra.mxu0 0.0
        %511 = vmatprep.subr.mxu0 0.0
        %512 = vmatpush1.msra.mxu0 0.0
        %513 = vmatprep.subr.mxu0 0.0
        %514 = vmatpush1.msra.mxu0 0.0
        %515 = vmatprep.subr.mxu0 0.0
        %516 = vmatpush1.msra.mxu0 0.0
        %517 = vmatprep.subr.mxu0 0.0
        %518 = vmatpush1.msra.mxu0 0.0
        %519 = vmatprep.subr.mxu0 0.0
        %520 = vmatpush1.msra.mxu0 0.0
        %521 = vmatprep.subr.mxu0 0.0
        %522 = vmatpush1.msra.mxu0 0.0
        %523 = vmatprep.subr.mxu0 0.0
        %524 = vmatpush1.msra.mxu0 0.0
        %525 = vmatprep.subr.mxu0 0.0
        %526 = vmatpush1.msra.mxu0 0.0
        %527 = vmatprep.subr.mxu0 0.0
        %528 = vmatpush1.msra.mxu0 0.0
        %529 = vmatprep.subr.mxu0 0.0
        %530 = vmatpush1.msra.mxu0 0.0
        %531 = vmatprep.subr.mxu0 0.0
        %532 = vmatpush1.msra.mxu0 0.0
        %533 = vmatprep.subr.mxu0 0.0
        %534 = vmatpush1.msra.mxu0 0.0
        %535 = vmatprep.subr.mxu0 0.0
        %536 = vmatpush1.msra.mxu0 0.0
        %537 = vmatprep.subr.mxu0 0.0
        %538 = vmatpush1.msra.mxu0 0.0
        %539 = vmatprep.subr.mxu0 0.0
        %540 = vmatpush1.msra.mxu0 0.0
        %541 = vmatprep.mubr.f32.mxu0 0.0
        %542 = vmatmul.mubr.f32.gmra.mrb[0].mxu0 %v472
        %v543 = vpop.f32.mrb[0].mxu0
        %v544 = vadd.f32 %v468, %v543
        %v545 = vpop.f32.mrb[0].mxu0
        %546 = vmatprep.mubr.f32.mxu0 0.0
        %547 = vmatmul.mubr.f32.gmra.mrb[0].mxu0 %v475
        %v548 = vpop.f32.mrb[0].mxu0
        %v549 = vadd.f32 %v468, %v548
        %v550 = vpop.f32.mrb[0].mxu0
        %551 = vdwg.mxu0
        %v552 = vld [vmem:[%s4] sm:$0xff]
        %v553 = vld [vmem:[%s4 + $0x8] sm:$0xff]
        %v554 = vld [vmem:[%s4 + $0x10] sm:$0xff]
        %v555 = vld [vmem:[%s4 + $0x18] sm:$0xff]
        %558 = vrot.lane.b32.xlu0 %v544, 96
        %v559 = vpop.permute.xlu0 %558
        %560 = vrot.lane.b32.xlu0 %v549, 96
        %v561 = vpop.permute.xlu0 %560
        %vm562 = vcmask 64512
        %v563 = vsel %vm562, %v544, 0
        %v565 = vsel %vm562, %v549, 0
        %v567 = vsel %vm562, %v559, 0
        %v569 = vsel %vm562, %v561, 0
        %571 = vmatprep.subr.mxu0 0.0
        %572 = vmatpush1.xpose.msra.mxu0 %v567
        %573 = vmatprep.subr.mxu0 0.0
        %574 = vmatpush1.xpose.msra.mxu0 %v569
        %575 = vmatprep.subr.mxu0 0.0
        %576 = vmatpush1.xpose.msra.mxu0 0.0
        %577 = vmatprep.subr.mxu0 0.0
        %578 = vmatpush1.xpose.msra.mxu0 0.0
        %579 = vmatprep.subr.mxu0 0.0
        %580 = vmatpush1.xpose.msra.mxu0 0.0
        %581 = vmatprep.subr.mxu0 0.0
        %582 = vmatpush1.xpose.msra.mxu0 0.0
        %583 = vmatprep.subr.mxu0 0.0
        %584 = vmatpush1.xpose.msra.mxu0 0.0
        %585 = vmatprep.subr.mxu0 0.0
        %586 = vmatpush1.xpose.msra.mxu0 0.0
        %587 = vmatprep.subr.mxu0 0.0
        %588 = vmatpush1.xpose.msra.mxu0 0.0
        %589 = vmatprep.subr.mxu0 0.0
        %590 = vmatpush1.xpose.msra.mxu0 0.0
        %591 = vmatprep.subr.mxu0 0.0
        %592 = vmatpush1.xpose.msra.mxu0 0.0
        %593 = vmatprep.subr.mxu0 0.0
        %594 = vmatpush1.xpose.msra.mxu0 0.0
        %595 = vmatprep.subr.mxu0 0.0
        %596 = vmatpush1.xpose.msra.mxu0 0.0
        %597 = vmatprep.subr.mxu0 0.0
        %598 = vmatpush1.xpose.msra.mxu0 0.0
        %599 = vmatprep.subr.mxu0 0.0
        %600 = vmatpush1.xpose.msra.mxu0 0.0
        %601 = vmatprep.subr.mxu0 0.0
        %602 = vmatpush1.xpose.msra.mxu0 0.0
        %603 = vmatprep.subr.mxu0 0.0
        %604 = vmatpush1.xpose.msra.mxu0 0.0
        %605 = vmatprep.subr.mxu0 0.0
        %606 = vmatpush1.xpose.msra.mxu0 0.0
        %607 = vmatprep.subr.mxu0 0.0
        %608 = vmatpush1.xpose.msra.mxu0 0.0
        %609 = vmatprep.subr.mxu0 0.0
        %610 = vmatpush1.xpose.msra.mxu0 0.0
        %611 = vmatprep.subr.mxu0 0.0
        %612 = vmatpush1.xpose.msra.mxu0 0.0
        %613 = vmatprep.subr.mxu0 0.0
        %614 = vmatpush1.xpose.msra.mxu0 0.0
        %615 = vmatprep.subr.mxu0 0.0
        %616 = vmatpush1.xpose.msra.mxu0 0.0
        %617 = vmatprep.subr.mxu0 0.0
        %618 = vmatpush1.xpose.msra.mxu0 0.0
        %619 = vmatprep.subr.mxu0 0.0
        %620 = vmatpush1.xpose.msra.mxu0 0.0
        %621 = vmatprep.subr.mxu0 0.0
        %622 = vmatpush1.xpose.msra.mxu0 0.0
        %623 = vmatprep.subr.mxu0 0.0
        %624 = vmatpush1.xpose.msra.mxu0 0.0
        %625 = vmatprep.subr.mxu0 0.0
        %626 = vmatpush1.xpose.msra.mxu0 0.0
        %627 = vmatprep.subr.mxu0 0.0
        %628 = vmatpush1.xpose.msra.mxu0 0.0
        %629 = vmatprep.subr.mxu0 0.0
        %630 = vmatpush1.xpose.msra.mxu0 0.0
        %631 = vmatprep.subr.mxu0 0.0
        %632 = vmatpush1.xpose.msra.mxu0 0.0
        %633 = vmatprep.subr.mxu0 0.0
        %634 = vmatpush1.xpose.msra.mxu0 0.0
        %635 = vmatprep.mubr.f32.mxu0 0.0
        %636 = vmatmul.mubr.f32.gmra.mrb[0].mxu0 %v563
        %v637 = vpop.f32.mrb[0].mxu0
        %v638 = vadd.f32 %v457, %v637
        %v639 = vpop.f32.mrb[0].mxu0
        %640 = vmatprep.mubr.f32.mxu0 0.0
        %641 = vmatmul.mubr.f32.gmra.mrb[0].mxu0 %v565
        %v642 = vpop.f32.mrb[0].mxu0
        %v643 = vadd.f32 %v458, %v642
        %v644 = vpop.f32.mrb[0].mxu0
        %645 = vdwg.mxu0
        %vm646 = vcmask 130048
        %v647 = vsel %vm646, %v638, -inf
        %648 = vmax.xlane.f32.xlu0 %v647
        %v649 = vpop.xlane.xlu0 %648
        %v650 = vsel %vm646, %v643, -inf
        %651 = vmax.xlane.f32.xlu0 %v650
        %v652 = vpop.xlane.xlu0 %651
        %v653 = vsub.f32 %v638, %v649
        %v654 = vsub.f32 %v643, %v652
        %v655 = vmul.f32 %v653, 1.442695
        %v656 = vpow.pop %v655
        %v657 = vmul.f32 %v654, 1.442695
        %v658 = vpow.pop %v657
        %v659 = vsel %vm646, %v656, 0.0
        %660 = vadd.xlane.f32.xlu0 %v659
        %v661 = vpop.xlane.xlu0 %660
        %v662 = vsel %vm646, %v658, 0.0
        %663 = vadd.xlane.f32.xlu0 %v662
        %v664 = vpop.xlane.xlu0 %663
        %v665 = vrcp.pop %v661
        %v666 = vrcp.pop %v664
        %v667 = vmul.f32 %v656, %v665
        %v668 = vmul.f32 %v658, %v666
        %669 = vrot.lane.b32.xlu0 %v544, 64
        %v670 = vpop.permute.xlu0 %669
        %671 = vrot.lane.b32.xlu0 %v549, 64
        %v672 = vpop.permute.xlu0 %671
        %v676 = vsel %vm646, %v667, 0
        %v679 = vsel %vm646, %v668, 0
        %681 = vmatprep.subr.mxu0 0.0
        %682 = vmatpush1.msra.mxu0 %v670
        %683 = vmatprep.subr.mxu0 0.0
        %684 = vmatpush1.msra.mxu0 %v672
        %685 = vmatprep.subr.mxu0 0.0
        %686 = vmatpush1.msra.mxu0 0.0
        %687 = vmatprep.subr.mxu0 0.0
        %688 = vmatpush1.msra.mxu0 0.0
        %689 = vmatprep.subr.mxu0 0.0
        %690 = vmatpush1.msra.mxu0 0.0
        %691 = vmatprep.subr.mxu0 0.0
        %692 = vmatpush1.msra.mxu0 0.0
        %693 = vmatprep.subr.mxu0 0.0
        %694 = vmatpush1.msra.mxu0 0.0
        %695 = vmatprep.subr.mxu0 0.0
        %696 = vmatpush1.msra.mxu0 0.0
        %697 = vmatprep.subr.mxu0 0.0
        %698 = vmatpush1.msra.mxu0 0.0
        %699 = vmatprep.subr.mxu0 0.0
        %700 = vmatpush1.msra.mxu0 0.0
        %701 = vmatprep.subr.mxu0 0.0
        %702 = vmatpush1.msra.mxu0 0.0
        %703 = vmatprep.subr.mxu0 0.0
        %704 = vmatpush1.msra.mxu0 0.0
        %705 = vmatprep.subr.mxu0 0.0
        %706 = vmatpush1.msra.mxu0 0.0
        %707 = vmatprep.subr.mxu0 0.0
        %708 = vmatpush1.msra.mxu0 0.0
        %709 = vmatprep.subr.mxu0 0.0
        %710 = vmatpush1.msra.mxu0 0.0
        %711 = vmatprep.subr.mxu0 0.0
        %712 = vmatpush1.msra.mxu0 0.0
        %713 = vmatprep.subr.mxu0 0.0
        %714 = vmatpush1.msra.mxu0 0.0
        %715 = vmatprep.subr.mxu0 0.0
        %716 = vmatpush1.msra.mxu0 0.0
        %717 = vmatprep.subr.mxu0 0.0
        %718 = vmatpush1.msra.mxu0 0.0
        %719 = vmatprep.subr.mxu0 0.0
        %720 = vmatpush1.msra.mxu0 0.0
        %721 = vmatprep.subr.mxu0 0.0
        %722 = vmatpush1.msra.mxu0 0.0
        %723 = vmatprep.subr.mxu0 0.0
        %724 = vmatpush1.msra.mxu0 0.0
        %725 = vmatprep.subr.mxu0 0.0
        %726 = vmatpush1.msra.mxu0 0.0
        %727 = vmatprep.subr.mxu0 0.0
        %728 = vmatpush1.msra.mxu0 0.0
        %729 = vmatprep.subr.mxu0 0.0
        %730 = vmatpush1.msra.mxu0 0.0
        %731 = vmatprep.subr.mxu0 0.0
        %732 = vmatpush1.msra.mxu0 0.0
        %733 = vmatprep.subr.mxu0 0.0
        %734 = vmatpush1.msra.mxu0 0.0
        %735 = vmatprep.subr.mxu0 0.0
        %736 = vmatpush1.msra.mxu0 0.0
        %737 = vmatprep.subr.mxu0 0.0
        %738 = vmatpush1.msra.mxu0 0.0
        %739 = vmatprep.subr.mxu0 0.0
        %740 = vmatpush1.msra.mxu0 0.0
        %741 = vmatprep.subr.mxu0 0.0
        %742 = vmatpush1.msra.mxu0 0.0
        %743 = vmatprep.subr.mxu0 0.0
        %744 = vmatpush1.msra.mxu0 0.0
        %745 = vmatprep.mubr.f32.mxu0 0.0
        %746 = vmatmul.mubr.f32.gmra.mrb[0].mxu0 %v676
        %v747 = vpop.f32.mrb[0].mxu0
        %v748 = vadd.f32 0.0, %v747
        %v749 = vpop.f32.mrb[0].mxu0
        %750 = vmatprep.mubr.f32.mxu0 0.0
        %751 = vmatmul.mubr.f32.gmra.mrb[0].mxu0 %v679
        %v752 = vpop.f32.mrb[0].mxu0
        %v753 = vadd.f32 0.0, %v752
        %v754 = vpop.f32.mrb[0].mxu0
        %755 = vdwg.mxu0
        %756 = vrot.lane.b32.xlu0 %v544, 120
        %v757 = vpop.permute.xlu0 %756
        %758 = vrot.lane.b32.xlu0 %v549, 120
        %v759 = vpop.permute.xlu0 %758
        %760 = vrot.lane.b32.xlu0 %v544, 88
        %v761 = vpop.permute.xlu0 %760
        %762 = vrot.lane.b32.xlu0 %v549, 88
        %v763 = vpop.permute.xlu0 %762
        %v764 = vsel %vm562, %v757, 0
        %v766 = vsel %vm562, %v759, 0
        %v768 = vsel %vm562, %v761, 0
        %v770 = vsel %vm562, %v763, 0
        %772 = vmatprep.subr.mxu0 0.0
        %773 = vmatpush1.xpose.msra.mxu0 %v768
        %774 = vmatprep.subr.mxu0 0.0
        %775 = vmatpush1.xpose.msra.mxu0 %v770
        %776 = vmatprep.subr.mxu0 0.0
        %777 = vmatpush1.xpose.msra.mxu0 0.0
        %778 = vmatprep.subr.mxu0 0.0
        %779 = vmatpush1.xpose.msra.mxu0 0.0
        %780 = vmatprep.subr.mxu0 0.0
        %781 = vmatpush1.xpose.msra.mxu0 0.0
        %782 = vmatprep.subr.mxu0 0.0
        %783 = vmatpush1.xpose.msra.mxu0 0.0
        %784 = vmatprep.subr.mxu0 0.0
        %785 = vmatpush1.xpose.msra.mxu0 0.0
        %786 = vmatprep.subr.mxu0 0.0
        %787 = vmatpush1.xpose.msra.mxu0 0.0
        %788 = vmatprep.subr.mxu0 0.0
        %789 = vmatpush1.xpose.msra.mxu0 0.0
        %790 = vmatprep.subr.mxu0 0.0
        %791 = vmatpush1.xpose.msra.mxu0 0.0
        %792 = vmatprep.subr.mxu0 0.0
        %793 = vmatpush1.xpose.msra.mxu0 0.0
        %794 = vmatprep.subr.mxu0 0.0
        %795 = vmatpush1.xpose.msra.mxu0 0.0
        %796 = vmatprep.subr.mxu0 0.0
        %797 = vmatpush1.xpose.msra.mxu0 0.0
        %798 = vmatprep.subr.mxu0 0.0
        %799 = vmatpush1.xpose.msra.mxu0 0.0
        %800 = vmatprep.subr.mxu0 0.0
        %801 = vmatpush1.xpose.msra.mxu0 0.0
        %802 = vmatprep.subr.mxu0 0.0
        %803 = vmatpush1.xpose.msra.mxu0 0.0
        %804 = vmatprep.subr.mxu0 0.0
        %805 = vmatpush1.xpose.msra.mxu0 0.0
        %806 = vmatprep.subr.mxu0 0.0
        %807 = vmatpush1.xpose.msra.mxu0 0.0
        %808 = vmatprep.subr.mxu0 0.0
        %809 = vmatpush1.xpose.msra.mxu0 0.0
        %810 = vmatprep.subr.mxu0 0.0
        %811 = vmatpush1.xpose.msra.mxu0 0.0
        %812 = vmatprep.subr.mxu0 0.0
        %813 = vmatpush1.xpose.msra.mxu0 0.0
        %814 = vmatprep.subr.mxu0 0.0
        %815 = vmatpush1.xpose.msra.mxu0 0.0
        %816 = vmatprep.subr.mxu0 0.0
        %817 = vmatpush1.xpose.msra.mxu0 0.0
        %818 = vmatprep.subr.mxu0 0.0
        %819 = vmatpush1.xpose.msra.mxu0 0.0
        %820 = vmatprep.subr.mxu0 0.0
        %821 = vmatpush1.xpose.msra.mxu0 0.0
        %822 = vmatprep.subr.mxu0 0.0
        %823 = vmatpush1.xpose.msra.mxu0 0.0
        %824 = vmatprep.subr.mxu0 0.0
        %825 = vmatpush1.xpose.msra.mxu0 0.0
        %826 = vmatprep.subr.mxu0 0.0
        %827 = vmatpush1.xpose.msra.mxu0 0.0
        %828 = vmatprep.subr.mxu0 0.0
        %829 = vmatpush1.xpose.msra.mxu0 0.0
        %830 = vmatprep.subr.mxu0 0.0
        %831 = vmatpush1.xpose.msra.mxu0 0.0
        %832 = vmatprep.subr.mxu0 0.0
        %833 = vmatpush1.xpose.msra.mxu0 0.0
        %834 = vmatprep.subr.mxu0 0.0
        %835 = vmatpush1.xpose.msra.mxu0 0.0
        %836 = vmatprep.mubr.f32.mxu0 0.0
        %837 = vmatmul.mubr.f32.gmra.mrb[0].mxu0 %v764
        %v838 = vpop.f32.mrb[0].mxu0
        %v839 = vadd.f32 %v457, %v838
        %v840 = vpop.f32.mrb[0].mxu0
        %841 = vmatprep.mubr.f32.mxu0 0.0
        %842 = vmatmul.mubr.f32.gmra.mrb[0].mxu0 %v766
        %v843 = vpop.f32.mrb[0].mxu0
        %v844 = vadd.f32 %v458, %v843
        %v845 = vpop.f32.mrb[0].mxu0
        %846 = vdwg.mxu0
        %v847 = vsel %vm646, %v839, -inf
        %848 = vmax.xlane.f32.xlu0 %v847
        %v849 = vpop.xlane.xlu0 %848
        %v850 = vsel %vm646, %v844, -inf
        %851 = vmax.xlane.f32.xlu0 %v850
        %v852 = vpop.xlane.xlu0 %851
        %v853 = vsub.f32 %v839, %v849
        %v854 = vsub.f32 %v844, %v852
        %v855 = vmul.f32 %v853, 1.442695
        %v856 = vpow.pop %v855
        %v857 = vmul.f32 %v854, 1.442695
        %v858 = vpow.pop %v857
        %v859 = vsel %vm646, %v856, 0.0
        %860 = vadd.xlane.f32.xlu0 %v859
        %v861 = vpop.xlane.xlu0 %860
        %v862 = vsel %vm646, %v858, 0.0
        %863 = vadd.xlane.f32.xlu0 %v862
        %v864 = vpop.xlane.xlu0 %863
        %v865 = vrcp.pop %v861
        %v866 = vrcp.pop %v864
        %v867 = vmul.f32 %v856, %v865
        %v868 = vmul.f32 %v858, %v866
        %869 = vrot.lane.b32.xlu0 %v544, 56
        %v870 = vpop.permute.xlu0 %869
        %871 = vrot.lane.b32.xlu0 %v549, 56
        %v872 = vpop.permute.xlu0 %871
        %v876 = vsel %vm646, %v867, 0
        %v879 = vsel %vm646, %v868, 0
        %881 = vmatprep.subr.mxu0 0.0
        %882 = vmatpush1.msra.mxu0 %v870
        %883 = vmatprep.subr.mxu0 0.0
        %884 = vmatpush1.msra.mxu0 %v872
        %885 = vmatprep.subr.mxu0 0.0
        %886 = vmatpush1.msra.mxu0 0.0
        %887 = vmatprep.subr.mxu0 0.0
        %888 = vmatpush1.msra.mxu0 0.0
        %889 = vmatprep.subr.mxu0 0.0
        %890 = vmatpush1.msra.mxu0 0.0
        %891 = vmatprep.subr.mxu0 0.0
        %892 = vmatpush1.msra.mxu0 0.0
        %893 = vmatprep.subr.mxu0 0.0
        %894 = vmatpush1.msra.mxu0 0.0
        %895 = vmatprep.subr.mxu0 0.0
        %896 = vmatpush1.msra.mxu0 0.0
        %897 = vmatprep.subr.mxu0 0.0
        %898 = vmatpush1.msra.mxu0 0.0
        %899 = vmatprep.subr.mxu0 0.0
        %900 = vmatpush1.msra.mxu0 0.0
        %901 = vmatprep.subr.mxu0 0.0
        %902 = vmatpush1.msra.mxu0 0.0
        %903 = vmatprep.subr.mxu0 0.0
        %904 = vmatpush1.msra.mxu0 0.0
        %905 = vmatprep.subr.mxu0 0.0
        %906 = vmatpush1.msra.mxu0 0.0
        %907 = vmatprep.subr.mxu0 0.0
        %908 = vmatpush1.msra.mxu0 0.0
        %909 = vmatprep.subr.mxu0 0.0
        %910 = vmatpush1.msra.mxu0 0.0
        %911 = vmatprep.subr.mxu0 0.0
        %912 = vmatpush1.msra.mxu0 0.0
        %913 = vmatprep.subr.mxu0 0.0
        %914 = vmatpush1.msra.mxu0 0.0
        %915 = vmatprep.subr.mxu0 0.0
        %916 = vmatpush1.msra.mxu0 0.0
        %917 = vmatprep.subr.mxu0 0.0
        %918 = vmatpush1.msra.mxu0 0.0
        %919 = vmatprep.subr.mxu0 0.0
        %920 = vmatpush1.msra.mxu0 0.0
        %921 = vmatprep.subr.mxu0 0.0
        %922 = vmatpush1.msra.mxu0 0.0
        %923 = vmatprep.subr.mxu0 0.0
        %924 = vmatpush1.msra.mxu0 0.0
        %925 = vmatprep.subr.mxu0 0.0
        %926 = vmatpush1.msra.mxu0 0.0
        %927 = vmatprep.subr.mxu0 0.0
        %928 = vmatpush1.msra.mxu0 0.0
        %929 = vmatprep.subr.mxu0 0.0
        %930 = vmatpush1.msra.mxu0 0.0
        %931 = vmatprep.subr.mxu0 0.0
        %932 = vmatpush1.msra.mxu0 0.0
        %933 = vmatprep.subr.mxu0 0.0
        %934 = vmatpush1.msra.mxu0 0.0
        %935 = vmatprep.subr.mxu0 0.0
        %936 = vmatpush1.msra.mxu0 0.0
        %937 = vmatprep.subr.mxu0 0.0
        %938 = vmatpush1.msra.mxu0 0.0
        %939 = vmatprep.subr.mxu0 0.0
        %940 = vmatpush1.msra.mxu0 0.0
        %941 = vmatprep.subr.mxu0 0.0
        %942 = vmatpush1.msra.mxu0 0.0
        %943 = vmatprep.subr.mxu0 0.0
        %944 = vmatpush1.msra.mxu0 0.0
        %945 = vmatprep.mubr.f32.mxu0 0.0
        %946 = vmatmul.mubr.f32.gmra.mrb[0].mxu0 %v876
        %v947 = vpop.f32.mrb[0].mxu0
        %v948 = vadd.f32 0.0, %v947
        %v949 = vpop.f32.mrb[0].mxu0
        %950 = vmatprep.mubr.f32.mxu0 0.0
        %951 = vmatmul.mubr.f32.gmra.mrb[0].mxu0 %v879
        %v952 = vpop.f32.mrb[0].mxu0
        %v953 = vadd.f32 0.0, %v952
        %v954 = vpop.f32.mrb[0].mxu0
        %955 = vdwg.mxu0
        %v957 = vsel %vm562, %v948, 0
        %v960 = vsel %vm562, %v953, 0
        %962 = vmatprep.subr.mxu0 0.0
        %963 = vmatpush1.msra.mxu0 %v553
        %964 = vmatprep.subr.mxu0 0.0
        %965 = vmatpush1.msra.mxu0 0.0
        %966 = vmatprep.subr.mxu0 0.0
        %967 = vmatpush1.msra.mxu0 0.0
        %968 = vmatprep.subr.mxu0 0.0
        %969 = vmatpush1.msra.mxu0 0.0
        %970 = vmatprep.subr.mxu0 0.0
        %971 = vmatpush1.msra.mxu0 0.0
        %972 = vmatprep.subr.mxu0 0.0
        %973 = vmatpush1.msra.mxu0 0.0
        %974 = vmatprep.subr.mxu0 0.0
        %975 = vmatpush1.msra.mxu0 0.0
        %976 = vmatprep.subr.mxu0 0.0
        %977 = vmatpush1.msra.mxu0 0.0
        %978 = vmatprep.subr.mxu0 0.0
        %979 = vmatpush1.msra.mxu0 0.0
        %980 = vmatprep.subr.mxu0 0.0
        %981 = vmatpush1.msra.mxu0 0.0
        %982 = vmatprep.subr.mxu0 0.0
        %983 = vmatpush1.msra.mxu0 0.0
        %984 = vmatprep.subr.mxu0 0.0
        %985 = vmatpush1.msra.mxu0 0.0
        %986 = vmatprep.subr.mxu0 0.0
        %987 = vmatpush1.msra.mxu0 0.0
        %988 = vmatprep.subr.mxu0 0.0
        %989 = vmatpush1.msra.mxu0 0.0
        %990 = vmatprep.subr.mxu0 0.0
        %991 = vmatpush1.msra.mxu0 0.0
        %992 = vmatprep.subr.mxu0 0.0
        %993 = vmatpush1.msra.mxu0 0.0
        %994 = vmatprep.subr.mxu0 0.0
        %995 = vmatpush1.msra.mxu0 0.0
        %996 = vmatprep.subr.mxu0 0.0
        %997 = vmatpush1.msra.mxu0 0.0
        %998 = vmatprep.subr.mxu0 0.0
        %999 = vmatpush1.msra.mxu0 0.0
        %1000 = vmatprep.subr.mxu0 0.0
        %1001 = vmatpush1.msra.mxu0 0.0
        %1002 = vmatprep.subr.mxu0 0.0
        %1003 = vmatpush1.msra.mxu0 0.0
        %1004 = vmatprep.subr.mxu0 0.0
        %1005 = vmatpush1.msra.mxu0 0.0
        %1006 = vmatprep.subr.mxu0 0.0
        %1007 = vmatpush1.msra.mxu0 0.0
        %1008 = vmatprep.subr.mxu0 0.0
        %1009 = vmatpush1.msra.mxu0 0.0
        %1010 = vmatprep.subr.mxu0 0.0
        %1011 = vmatpush1.msra.mxu0 0.0
        %1012 = vmatprep.subr.mxu0 0.0
        %1013 = vmatpush1.msra.mxu0 0.0
        %1014 = vmatprep.subr.mxu0 0.0
        %1015 = vmatpush1.msra.mxu0 0.0
        %1016 = vmatprep.subr.mxu0 0.0
        %1017 = vmatpush1.msra.mxu0 0.0
        %1018 = vmatprep.subr.mxu0 0.0
        %1019 = vmatpush1.msra.mxu0 0.0
        %1020 = vmatprep.subr.mxu0 0.0
        %1021 = vmatpush1.msra.mxu0 0.0
        %1022 = vmatprep.subr.mxu0 0.0
        %1023 = vmatpush1.msra.mxu0 0.0
        %1024 = vmatprep.subr.mxu0 0.0
        %1025 = vmatpush1.msra.mxu0 0.0
        %1026 = vmatprep.mubr.f32.mxu0 0.0
        %1027 = vmatmul.mubr.f32.gmra.mrb[0].mxu0 %v957
        %v1028 = vpop.f32.mrb[0].mxu0
        %v1029 = vadd.f32 0.0, %v1028
        %v1030 = vpop.f32.mrb[0].mxu0
        %1031 = vmatprep.mubr.f32.mxu0 0.0
        %1032 = vmatmul.mubr.f32.gmra.mrb[0].mxu0 %v960
        %v1033 = vpop.f32.mrb[0].mxu0
        %v1034 = vadd.f32 0.0, %v1033
        %v1035 = vpop.f32.mrb[0].mxu0
        %1036 = vdwg.mxu0
        %v1038 = vsel %vm562, %v748, 0
        %v1041 = vsel %vm562, %v753, 0
        %1043 = vmatprep.subr.mxu0 0.0
        %1044 = vmatpush1.msra.mxu0 %v552
        %1045 = vmatprep.subr.mxu0 0.0
        %1046 = vmatpush1.msra.mxu0 0.0
        %1047 = vmatprep.subr.mxu0 0.0
        %1048 = vmatpush1.msra.mxu0 0.0
        %1049 = vmatprep.subr.mxu0 0.0
        %1050 = vmatpush1.msra.mxu0 0.0
        %1051 = vmatprep.subr.mxu0 0.0
        %1052 = vmatpush1.msra.mxu0 0.0
        %1053 = vmatprep.subr.mxu0 0.0
        %1054 = vmatpush1.msra.mxu0 0.0
        %1055 = vmatprep.subr.mxu0 0.0
        %1056 = vmatpush1.msra.mxu0 0.0
        %1057 = vmatprep.subr.mxu0 0.0
        %1058 = vmatpush1.msra.mxu0 0.0
        %1059 = vmatprep.subr.mxu0 0.0
        %1060 = vmatpush1.msra.mxu0 0.0
        %1061 = vmatprep.subr.mxu0 0.0
        %1062 = vmatpush1.msra.mxu0 0.0
        %1063 = vmatprep.subr.mxu0 0.0
        %1064 = vmatpush1.msra.mxu0 0.0
        %1065 = vmatprep.subr.mxu0 0.0
        %1066 = vmatpush1.msra.mxu0 0.0
        %1067 = vmatprep.subr.mxu0 0.0
        %1068 = vmatpush1.msra.mxu0 0.0
        %1069 = vmatprep.subr.mxu0 0.0
        %1070 = vmatpush1.msra.mxu0 0.0
        %1071 = vmatprep.subr.mxu0 0.0
        %1072 = vmatpush1.msra.mxu0 0.0
        %1073 = vmatprep.subr.mxu0 0.0
        %1074 = vmatpush1.msra.mxu0 0.0
        %1075 = vmatprep.subr.mxu0 0.0
        %1076 = vmatpush1.msra.mxu0 0.0
        %1077 = vmatprep.subr.mxu0 0.0
        %1078 = vmatpush1.msra.mxu0 0.0
        %1079 = vmatprep.subr.mxu0 0.0
        %1080 = vmatpush1.msra.mxu0 0.0
        %1081 = vmatprep.subr.mxu0 0.0
        %1082 = vmatpush1.msra.mxu0 0.0
        %1083 = vmatprep.subr.mxu0 0.0
        %1084 = vmatpush1.msra.mxu0 0.0
        %1085 = vmatprep.subr.mxu0 0.0
        %1086 = vmatpush1.msra.mxu0 0.0
        %1087 = vmatprep.subr.mxu0 0.0
        %1088 = vmatpush1.msra.mxu0 0.0
        %1089 = vmatprep.subr.mxu0 0.0
        %1090 = vmatpush1.msra.mxu0 0.0
        %1091 = vmatprep.subr.mxu0 0.0
        %1092 = vmatpush1.msra.mxu0 0.0
        %1093 = vmatprep.subr.mxu0 0.0
        %1094 = vmatpush1.msra.mxu0 0.0
        %1095 = vmatprep.subr.mxu0 0.0
        %1096 = vmatpush1.msra.mxu0 0.0
        %1097 = vmatprep.subr.mxu0 0.0
        %1098 = vmatpush1.msra.mxu0 0.0
        %1099 = vmatprep.subr.mxu0 0.0
        %1100 = vmatpush1.msra.mxu0 0.0
        %1101 = vmatprep.subr.mxu0 0.0
        %1102 = vmatpush1.msra.mxu0 0.0
        %1103 = vmatprep.subr.mxu0 0.0
        %1104 = vmatpush1.msra.mxu0 0.0
        %1105 = vmatprep.subr.mxu0 0.0
        %1106 = vmatpush1.msra.mxu0 0.0
        %1107 = vmatprep.mubr.f32.mxu0 0.0
        %1108 = vmatmul.mubr.f32.gmra.mrb[0].mxu0 %v1038
        %v1109 = vpop.f32.mrb[0].mxu0
        %v1110 = vadd.f32 %v1029, %v1109
        %v1111 = vpop.f32.mrb[0].mxu0
        %1112 = vmatprep.mubr.f32.mxu0 0.0
        %1113 = vmatmul.mubr.f32.gmra.mrb[0].mxu0 %v1041
        %v1114 = vpop.f32.mrb[0].mxu0
        %v1115 = vadd.f32 %v1034, %v1114
        %v1116 = vpop.f32.mrb[0].mxu0
        %1117 = vdwg.mxu0
        %1118 = vrot.lane.b32.xlu0 %v544, 112
        %v1119 = vpop.permute.xlu0 %1118
        %1120 = vrot.lane.b32.xlu0 %v549, 112
        %v1121 = vpop.permute.xlu0 %1120
        %1122 = vrot.lane.b32.xlu0 %v544, 80
        %v1123 = vpop.permute.xlu0 %1122
        %1124 = vrot.lane.b32.xlu0 %v549, 80
        %v1125 = vpop.permute.xlu0 %1124
        %v1126 = vsel %vm562, %v1119, 0
        %v1128 = vsel %vm562, %v1121, 0
        %v1130 = vsel %vm562, %v1123, 0
        %v1132 = vsel %vm562, %v1125, 0
        %1134 = vmatprep.subr.mxu0 0.0
        %1135 = vmatpush1.xpose.msra.mxu0 %v1130
        %1136 = vmatprep.subr.mxu0 0.0
        %1137 = vmatpush1.xpose.msra.mxu0 %v1132
        %1138 = vmatprep.subr.mxu0 0.0
        %1139 = vmatpush1.xpose.msra.mxu0 0.0
        %1140 = vmatprep.subr.mxu0 0.0
        %1141 = vmatpush1.xpose.msra.mxu0 0.0
        %1142 = vmatprep.subr.mxu0 0.0
        %1143 = vmatpush1.xpose.msra.mxu0 0.0
        %1144 = vmatprep.subr.mxu0 0.0
        %1145 = vmatpush1.xpose.msra.mxu0 0.0
        %1146 = vmatprep.subr.mxu0 0.0
        %1147 = vmatpush1.xpose.msra.mxu0 0.0
        %1148 = vmatprep.subr.mxu0 0.0
        %1149 = vmatpush1.xpose.msra.mxu0 0.0
        %1150 = vmatprep.subr.mxu0 0.0
        %1151 = vmatpush1.xpose.msra.mxu0 0.0
        %1152 = vmatprep.subr.mxu0 0.0
        %1153 = vmatpush1.xpose.msra.mxu0 0.0
        %1154 = vmatprep.subr.mxu0 0.0
        %1155 = vmatpush1.xpose.msra.mxu0 0.0
        %1156 = vmatprep.subr.mxu0 0.0
        %1157 = vmatpush1.xpose.msra.mxu0 0.0
        %1158 = vmatprep.subr.mxu0 0.0
        %1159 = vmatpush1.xpose.msra.mxu0 0.0
        %1160 = vmatprep.subr.mxu0 0.0
        %1161 = vmatpush1.xpose.msra.mxu0 0.0
        %1162 = vmatprep.subr.mxu0 0.0
        %1163 = vmatpush1.xpose.msra.mxu0 0.0
        %1164 = vmatprep.subr.mxu0 0.0
        %1165 = vmatpush1.xpose.msra.mxu0 0.0
        %1166 = vmatprep.subr.mxu0 0.0
        %1167 = vmatpush1.xpose.msra.mxu0 0.0
        %1168 = vmatprep.subr.mxu0 0.0
        %1169 = vmatpush1.xpose.msra.mxu0 0.0
        %1170 = vmatprep.subr.mxu0 0.0
        %1171 = vmatpush1.xpose.msra.mxu0 0.0
        %1172 = vmatprep.subr.mxu0 0.0
        %1173 = vmatpush1.xpose.msra.mxu0 0.0
        %1174 = vmatprep.subr.mxu0 0.0
        %1175 = vmatpush1.xpose.msra.mxu0 0.0
        %1176 = vmatprep.subr.mxu0 0.0
        %1177 = vmatpush1.xpose.msra.mxu0 0.0
        %1178 = vmatprep.subr.mxu0 0.0
        %1179 = vmatpush1.xpose.msra.mxu0 0.0
        %1180 = vmatprep.subr.mxu0 0.0
        %1181 = vmatpush1.xpose.msra.mxu0 0.0
        %1182 = vmatprep.subr.mxu0 0.0
        %1183 = vmatpush1.xpose.msra.mxu0 0.0
        %1184 = vmatprep.subr.mxu0 0.0
        %1185 = vmatpush1.xpose.msra.mxu0 0.0
        %1186 = vmatprep.subr.mxu0 0.0
        %1187 = vmatpush1.xpose.msra.mxu0 0.0
        %1188 = vmatprep.subr.mxu0 0.0
        %1189 = vmatpush1.xpose.msra.mxu0 0.0
        %1190 = vmatprep.subr.mxu0 0.0
        %1191 = vmatpush1.xpose.msra.mxu0 0.0
        %1192 = vmatprep.subr.mxu0 0.0
        %1193 = vmatpush1.xpose.msra.mxu0 0.0
        %1194 = vmatprep.subr.mxu0 0.0
        %1195 = vmatpush1.xpose.msra.mxu0 0.0
        %1196 = vmatprep.subr.mxu0 0.0
        %1197 = vmatpush1.xpose.msra.mxu0 0.0
        %1198 = vmatprep.mubr.f32.mxu0 0.0
        %1199 = vmatmul.mubr.f32.gmra.mrb[0].mxu0 %v1126
        %v1200 = vpop.f32.mrb[0].mxu0
        %v1201 = vadd.f32 %v457, %v1200
        %v1202 = vpop.f32.mrb[0].mxu0
        %1203 = vmatprep.mubr.f32.mxu0 0.0
        %1204 = vmatmul.mubr.f32.gmra.mrb[0].mxu0 %v1128
        %v1205 = vpop.f32.mrb[0].mxu0
        %v1206 = vadd.f32 %v458, %v1205
        %v1207 = vpop.f32.mrb[0].mxu0
        %1208 = vdwg.mxu0
        %v1209 = vsel %vm646, %v1201, -inf
        %1210 = vmax.xlane.f32.xlu0 %v1209
        %v1211 = vpop.xlane.xlu0 %1210
        %v1212 = vsel %vm646, %v1206, -inf
        %1213 = vmax.xlane.f32.xlu0 %v1212
        %v1214 = vpop.xlane.xlu0 %1213
        %v1215 = vsub.f32 %v1201, %v1211
        %v1216 = vsub.f32 %v1206, %v1214
        %v1217 = vmul.f32 %v1215, 1.442695
        %v1218 = vpow.pop %v1217
        %v1219 = vmul.f32 %v1216, 1.442695
        %v1220 = vpow.pop %v1219
        %v1221 = vsel %vm646, %v1218, 0.0
        %1222 = vadd.xlane.f32.xlu0 %v1221
        %v1223 = vpop.xlane.xlu0 %1222
        %v1224 = vsel %vm646, %v1220, 0.0
        %1225 = vadd.xlane.f32.xlu0 %v1224
        %v1226 = vpop.xlane.xlu0 %1225
        %v1227 = vrcp.pop %v1223
        %v1228 = vrcp.pop %v1226
        %v1229 = vmul.f32 %v1218, %v1227
        %v1230 = vmul.f32 %v1220, %v1228
        %1231 = vrot.lane.b32.xlu0 %v544, 48
        %v1232 = vpop.permute.xlu0 %1231
        %1233 = vrot.lane.b32.xlu0 %v549, 48
        %v1234 = vpop.permute.xlu0 %1233
        %v1238 = vsel %vm646, %v1229, 0
        %v1241 = vsel %vm646, %v1230, 0
        %1243 = vmatprep.subr.mxu0 0.0
        %1244 = vmatpush1.msra.mxu0 %v1232
        %1245 = vmatprep.subr.mxu0 0.0
        %1246 = vmatpush1.msra.mxu0 %v1234
        %1247 = vmatprep.subr.mxu0 0.0
        %1248 = vmatpush1.msra.mxu0 0.0
        %1249 = vmatprep.subr.mxu0 0.0
        %1250 = vmatpush1.msra.mxu0 0.0
        %1251 = vmatprep.subr.mxu0 0.0
        %1252 = vmatpush1.msra.mxu0 0.0
        %1253 = vmatprep.subr.mxu0 0.0
        %1254 = vmatpush1.msra.mxu0 0.0
        %1255 = vmatprep.subr.mxu0 0.0
        %1256 = vmatpush1.msra.mxu0 0.0
        %1257 = vmatprep.subr.mxu0 0.0
        %1258 = vmatpush1.msra.mxu0 0.0
        %1259 = vmatprep.subr.mxu0 0.0
        %1260 = vmatpush1.msra.mxu0 0.0
        %1261 = vmatprep.subr.mxu0 0.0
        %1262 = vmatpush1.msra.mxu0 0.0
        %1263 = vmatprep.subr.mxu0 0.0
        %1264 = vmatpush1.msra.mxu0 0.0
        %1265 = vmatprep.subr.mxu0 0.0
        %1266 = vmatpush1.msra.mxu0 0.0
        %1267 = vmatprep.subr.mxu0 0.0
        %1268 = vmatpush1.msra.mxu0 0.0
        %1269 = vmatprep.subr.mxu0 0.0
        %1270 = vmatpush1.msra.mxu0 0.0
        %1271 = vmatprep.subr.mxu0 0.0
        %1272 = vmatpush1.msra.mxu0 0.0
        %1273 = vmatprep.subr.mxu0 0.0
        %1274 = vmatpush1.msra.mxu0 0.0
        %1275 = vmatprep.subr.mxu0 0.0
        %1276 = vmatpush1.msra.mxu0 0.0
        %1277 = vmatprep.subr.mxu0 0.0
        %1278 = vmatpush1.msra.mxu0 0.0
        %1279 = vmatprep.subr.mxu0 0.0
        %1280 = vmatpush1.msra.mxu0 0.0
        %1281 = vmatprep.subr.mxu0 0.0
        %1282 = vmatpush1.msra.mxu0 0.0
        %1283 = vmatprep.subr.mxu0 0.0
        %1284 = vmatpush1.msra.mxu0 0.0
        %1285 = vmatprep.subr.mxu0 0.0
        %1286 = vmatpush1.msra.mxu0 0.0
        %1287 = vmatprep.subr.mxu0 0.0
        %1288 = vmatpush1.msra.mxu0 0.0
        %1289 = vmatprep.subr.mxu0 0.0
        %1290 = vmatpush1.msra.mxu0 0.0
        %1291 = vmatprep.subr.mxu0 0.0
        %1292 = vmatpush1.msra.mxu0 0.0
        %1293 = vmatprep.subr.mxu0 0.0
        %1294 = vmatpush1.msra.mxu0 0.0
        %1295 = vmatprep.subr.mxu0 0.0
        %1296 = vmatpush1.msra.mxu0 0.0
        %1297 = vmatprep.subr.mxu0 0.0
        %1298 = vmatpush1.msra.mxu0 0.0
        %1299 = vmatprep.subr.mxu0 0.0
        %1300 = vmatpush1.msra.mxu0 0.0
        %1301 = vmatprep.subr.mxu0 0.0
        %1302 = vmatpush1.msra.mxu0 0.0
        %1303 = vmatprep.subr.mxu0 0.0
        %1304 = vmatpush1.msra.mxu0 0.0
        %1305 = vmatprep.subr.mxu0 0.0
        %1306 = vmatpush1.msra.mxu0 0.0
        %1307 = vmatprep.mubr.f32.mxu0 0.0
        %1308 = vmatmul.mubr.f32.gmra.mrb[0].mxu0 %v1238
        %v1309 = vpop.f32.mrb[0].mxu0
        %v1310 = vadd.f32 0.0, %v1309
        %v1311 = vpop.f32.mrb[0].mxu0
        %1312 = vmatprep.mubr.f32.mxu0 0.0
        %1313 = vmatmul.mubr.f32.gmra.mrb[0].mxu0 %v1241
        %v1314 = vpop.f32.mrb[0].mxu0
        %v1315 = vadd.f32 0.0, %v1314
        %v1316 = vpop.f32.mrb[0].mxu0
        %1317 = vdwg.mxu0
        %v1319 = vsel %vm562, %v1310, 0
        %v1322 = vsel %vm562, %v1315, 0
        %1324 = vmatprep.subr.mxu0 0.0
        %1325 = vmatpush1.msra.mxu0 %v554
        %1326 = vmatprep.subr.mxu0 0.0
        %1327 = vmatpush1.msra.mxu0 0.0
        %1328 = vmatprep.subr.mxu0 0.0
        %1329 = vmatpush1.msra.mxu0 0.0
        %1330 = vmatprep.subr.mxu0 0.0
        %1331 = vmatpush1.msra.mxu0 0.0
        %1332 = vmatprep.subr.mxu0 0.0
        %1333 = vmatpush1.msra.mxu0 0.0
        %1334 = vmatprep.subr.mxu0 0.0
        %1335 = vmatpush1.msra.mxu0 0.0
        %1336 = vmatprep.subr.mxu0 0.0
        %1337 = vmatpush1.msra.mxu0 0.0
        %1338 = vmatprep.subr.mxu0 0.0
        %1339 = vmatpush1.msra.mxu0 0.0
        %1340 = vmatprep.subr.mxu0 0.0
        %1341 = vmatpush1.msra.mxu0 0.0
        %1342 = vmatprep.subr.mxu0 0.0
        %1343 = vmatpush1.msra.mxu0 0.0
        %1344 = vmatprep.subr.mxu0 0.0
        %1345 = vmatpush1.msra.mxu0 0.0
        %1346 = vmatprep.subr.mxu0 0.0
        %1347 = vmatpush1.msra.mxu0 0.0
        %1348 = vmatprep.subr.mxu0 0.0
        %1349 = vmatpush1.msra.mxu0 0.0
        %1350 = vmatprep.subr.mxu0 0.0
        %1351 = vmatpush1.msra.mxu0 0.0
        %1352 = vmatprep.subr.mxu0 0.0
        %1353 = vmatpush1.msra.mxu0 0.0
        %1354 = vmatprep.subr.mxu0 0.0
        %1355 = vmatpush1.msra.mxu0 0.0
        %1356 = vmatprep.subr.mxu0 0.0
        %1357 = vmatpush1.msra.mxu0 0.0
        %1358 = vmatprep.subr.mxu0 0.0
        %1359 = vmatpush1.msra.mxu0 0.0
        %1360 = vmatprep.subr.mxu0 0.0
        %1361 = vmatpush1.msra.mxu0 0.0
        %1362 = vmatprep.subr.mxu0 0.0
        %1363 = vmatpush1.msra.mxu0 0.0
        %1364 = vmatprep.subr.mxu0 0.0
        %1365 = vmatpush1.msra.mxu0 0.0
        %1366 = vmatprep.subr.mxu0 0.0
        %1367 = vmatpush1.msra.mxu0 0.0
        %1368 = vmatprep.subr.mxu0 0.0
        %1369 = vmatpush1.msra.mxu0 0.0
        %1370 = vmatprep.subr.mxu0 0.0
        %1371 = vmatpush1.msra.mxu0 0.0
        %1372 = vmatprep.subr.mxu0 0.0
        %1373 = vmatpush1.msra.mxu0 0.0
        %1374 = vmatprep.subr.mxu0 0.0
        %1375 = vmatpush1.msra.mxu0 0.0
        %1376 = vmatprep.subr.mxu0 0.0
        %1377 = vmatpush1.msra.mxu0 0.0
        %1378 = vmatprep.subr.mxu0 0.0
        %1379 = vmatpush1.msra.mxu0 0.0
        %1380 = vmatprep.subr.mxu0 0.0
        %1381 = vmatpush1.msra.mxu0 0.0
        %1382 = vmatprep.subr.mxu0 0.0
        %1383 = vmatpush1.msra.mxu0 0.0
        %1384 = vmatprep.subr.mxu0 0.0
        %1385 = vmatpush1.msra.mxu0 0.0
        %1386 = vmatprep.subr.mxu0 0.0
        %1387 = vmatpush1.msra.mxu0 0.0
        %1388 = vmatprep.mubr.f32.mxu0 0.0
        %1389 = vmatmul.mubr.f32.gmra.mrb[0].mxu0 %v1319
        %v1390 = vpop.f32.mrb[0].mxu0
        %v1391 = vadd.f32 0.0, %v1390
        %v1392 = vpop.f32.mrb[0].mxu0
        %1393 = vmatprep.mubr.f32.mxu0 0.0
        %1394 = vmatmul.mubr.f32.gmra.mrb[0].mxu0 %v1322
        %v1395 = vpop.f32.mrb[0].mxu0
        %v1396 = vadd.f32 0.0, %v1395
        %v1397 = vpop.f32.mrb[0].mxu0
        %1398 = vdwg.mxu0
        %v1399 = vadd.f32 %v1110, %v1391
        %v1400 = vadd.f32 %v1115, %v1396
        %1401 = vrot.lane.b32.xlu0 %v544, 104
        %v1402 = vpop.permute.xlu0 %1401
        %1403 = vrot.lane.b32.xlu0 %v549, 104
        %v1404 = vpop.permute.xlu0 %1403
        %1405 = vrot.lane.b32.xlu0 %v544, 72
        %v1406 = vpop.permute.xlu0 %1405
        %1407 = vrot.lane.b32.xlu0 %v549, 72
        %v1408 = vpop.permute.xlu0 %1407
        %v1409 = vsel %vm562, %v1402, 0
        %v1411 = vsel %vm562, %v1404, 0
        %v1413 = vsel %vm562, %v1406, 0
        %v1415 = vsel %vm562, %v1408, 0
        %1417 = vmatprep.subr.mxu0 0.0
        %1418 = vmatpush1.xpose.msra.mxu0 %v1413
        %1419 = vmatprep.subr.mxu0 0.0
        %1420 = vmatpush1.xpose.msra.mxu0 %v1415
        %1421 = vmatprep.subr.mxu0 0.0
        %1422 = vmatpush1.xpose.msra.mxu0 0.0
        %1423 = vmatprep.subr.mxu0 0.0
        %1424 = vmatpush1.xpose.msra.mxu0 0.0
        %1425 = vmatprep.subr.mxu0 0.0
        %1426 = vmatpush1.xpose.msra.mxu0 0.0
        %1427 = vmatprep.subr.mxu0 0.0
        %1428 = vmatpush1.xpose.msra.mxu0 0.0
        %1429 = vmatprep.subr.mxu0 0.0
        %1430 = vmatpush1.xpose.msra.mxu0 0.0
        %1431 = vmatprep.subr.mxu0 0.0
        %1432 = vmatpush1.xpose.msra.mxu0 0.0
        %1433 = vmatprep.subr.mxu0 0.0
        %1434 = vmatpush1.xpose.msra.mxu0 0.0
        %1435 = vmatprep.subr.mxu0 0.0
        %1436 = vmatpush1.xpose.msra.mxu0 0.0
        %1437 = vmatprep.subr.mxu0 0.0
        %1438 = vmatpush1.xpose.msra.mxu0 0.0
        %1439 = vmatprep.subr.mxu0 0.0
        %1440 = vmatpush1.xpose.msra.mxu0 0.0
        %1441 = vmatprep.subr.mxu0 0.0
        %1442 = vmatpush1.xpose.msra.mxu0 0.0
        %1443 = vmatprep.subr.mxu0 0.0
        %1444 = vmatpush1.xpose.msra.mxu0 0.0
        %1445 = vmatprep.subr.mxu0 0.0
        %1446 = vmatpush1.xpose.msra.mxu0 0.0
        %1447 = vmatprep.subr.mxu0 0.0
        %1448 = vmatpush1.xpose.msra.mxu0 0.0
        %1449 = vmatprep.subr.mxu0 0.0
        %1450 = vmatpush1.xpose.msra.mxu0 0.0
        %1451 = vmatprep.subr.mxu0 0.0
        %1452 = vmatpush1.xpose.msra.mxu0 0.0
        %1453 = vmatprep.subr.mxu0 0.0
        %1454 = vmatpush1.xpose.msra.mxu0 0.0
        %1455 = vmatprep.subr.mxu0 0.0
        %1456 = vmatpush1.xpose.msra.mxu0 0.0
        %1457 = vmatprep.subr.mxu0 0.0
        %1458 = vmatpush1.xpose.msra.mxu0 0.0
        %1459 = vmatprep.subr.mxu0 0.0
        %1460 = vmatpush1.xpose.msra.mxu0 0.0
        %1461 = vmatprep.subr.mxu0 0.0
        %1462 = vmatpush1.xpose.msra.mxu0 0.0
        %1463 = vmatprep.subr.mxu0 0.0
        %1464 = vmatpush1.xpose.msra.mxu0 0.0
        %1465 = vmatprep.subr.mxu0 0.0
        %1466 = vmatpush1.xpose.msra.mxu0 0.0
        %1467 = vmatprep.subr.mxu0 0.0
        %1468 = vmatpush1.xpose.msra.mxu0 0.0
        %1469 = vmatprep.subr.mxu0 0.0
        %1470 = vmatpush1.xpose.msra.mxu0 0.0
        %1471 = vmatprep.subr.mxu0 0.0
        %1472 = vmatpush1.xpose.msra.mxu0 0.0
        %1473 = vmatprep.subr.mxu0 0.0
        %1474 = vmatpush1.xpose.msra.mxu0 0.0
        %1475 = vmatprep.subr.mxu0 0.0
        %1476 = vmatpush1.xpose.msra.mxu0 0.0
        %1477 = vmatprep.subr.mxu0 0.0
        %1478 = vmatpush1.xpose.msra.mxu0 0.0
        %1479 = vmatprep.subr.mxu0 0.0
        %1480 = vmatpush1.xpose.msra.mxu0 0.0
        %1481 = vmatprep.mubr.f32.mxu0 0.0
        %1482 = vmatmul.mubr.f32.gmra.mrb[0].mxu0 %v1409
        %v1483 = vpop.f32.mrb[0].mxu0
        %v1484 = vadd.f32 %v457, %v1483
        %v1485 = vpop.f32.mrb[0].mxu0
        %1486 = vmatprep.mubr.f32.mxu0 0.0
        %1487 = vmatmul.mubr.f32.gmra.mrb[0].mxu0 %v1411
        %v1488 = vpop.f32.mrb[0].mxu0
        %v1489 = vadd.f32 %v458, %v1488
        %v1490 = vpop.f32.mrb[0].mxu0
        %1491 = vdwg.mxu0
        %v1492 = vsel %vm646, %v1484, -inf
        %1493 = vmax.xlane.f32.xlu0 %v1492
        %v1494 = vpop.xlane.xlu0 %1493
        %v1495 = vsel %vm646, %v1489, -inf
        %1496 = vmax.xlane.f32.xlu0 %v1495
        %v1497 = vpop.xlane.xlu0 %1496
        %v1498 = vsub.f32 %v1484, %v1494
        %v1499 = vsub.f32 %v1489, %v1497
        %v1500 = vmul.f32 %v1498, 1.442695
        %v1501 = vpow.pop %v1500
        %v1502 = vmul.f32 %v1499, 1.442695
        %v1503 = vpow.pop %v1502
        %v1504 = vsel %vm646, %v1501, 0.0
        %1505 = vadd.xlane.f32.xlu0 %v1504
        %v1506 = vpop.xlane.xlu0 %1505
        %v1507 = vsel %vm646, %v1503, 0.0
        %1508 = vadd.xlane.f32.xlu0 %v1507
        %v1509 = vpop.xlane.xlu0 %1508
        %v1510 = vrcp.pop %v1506
        %v1511 = vrcp.pop %v1509
        %v1512 = vmul.f32 %v1501, %v1510
        %v1513 = vmul.f32 %v1503, %v1511
        %1514 = vrot.lane.b32.xlu0 %v544, 40
        %v1515 = vpop.permute.xlu0 %1514
        %1516 = vrot.lane.b32.xlu0 %v549, 40
        %v1517 = vpop.permute.xlu0 %1516
        %v1521 = vsel %vm646, %v1512, 0
        %v1524 = vsel %vm646, %v1513, 0
        %1526 = vmatprep.subr.mxu0 0.0
        %1527 = vmatpush1.msra.mxu0 %v1515
        %1528 = vmatprep.subr.mxu0 0.0
        %1529 = vmatpush1.msra.mxu0 %v1517
        %1530 = vmatprep.subr.mxu0 0.0
        %1531 = vmatpush1.msra.mxu0 0.0
        %1532 = vmatprep.subr.mxu0 0.0
        %1533 = vmatpush1.msra.mxu0 0.0
        %1534 = vmatprep.subr.mxu0 0.0
        %1535 = vmatpush1.msra.mxu0 0.0
        %1536 = vmatprep.subr.mxu0 0.0
        %1537 = vmatpush1.msra.mxu0 0.0
        %1538 = vmatprep.subr.mxu0 0.0
        %1539 = vmatpush1.msra.mxu0 0.0
        %1540 = vmatprep.subr.mxu0 0.0
        %1541 = vmatpush1.msra.mxu0 0.0
        %1542 = vmatprep.subr.mxu0 0.0
        %1543 = vmatpush1.msra.mxu0 0.0
        %1544 = vmatprep.subr.mxu0 0.0
        %1545 = vmatpush1.msra.mxu0 0.0
        %1546 = vmatprep.subr.mxu0 0.0
        %1547 = vmatpush1.msra.mxu0 0.0
        %1548 = vmatprep.subr.mxu0 0.0
        %1549 = vmatpush1.msra.mxu0 0.0
        %1550 = vmatprep.subr.mxu0 0.0
        %1551 = vmatpush1.msra.mxu0 0.0
        %1552 = vmatprep.subr.mxu0 0.0
        %1553 = vmatpush1.msra.mxu0 0.0
        %1554 = vmatprep.subr.mxu0 0.0
        %1555 = vmatpush1.msra.mxu0 0.0
        %1556 = vmatprep.subr.mxu0 0.0
        %1557 = vmatpush1.msra.mxu0 0.0
        %1558 = vmatprep.subr.mxu0 0.0
        %1559 = vmatpush1.msra.mxu0 0.0
        %1560 = vmatprep.subr.mxu0 0.0
        %1561 = vmatpush1.msra.mxu0 0.0
        %1562 = vmatprep.subr.mxu0 0.0
        %1563 = vmatpush1.msra.mxu0 0.0
        %1564 = vmatprep.subr.mxu0 0.0
        %1565 = vmatpush1.msra.mxu0 0.0
        %1566 = vmatprep.subr.mxu0 0.0
        %1567 = vmatpush1.msra.mxu0 0.0
        %1568 = vmatprep.subr.mxu0 0.0
        %1569 = vmatpush1.msra.mxu0 0.0
        %1570 = vmatprep.subr.mxu0 0.0
        %1571 = vmatpush1.msra.mxu0 0.0
        %1572 = vmatprep.subr.mxu0 0.0
        %1573 = vmatpush1.msra.mxu0 0.0
        %1574 = vmatprep.subr.mxu0 0.0
        %1575 = vmatpush1.msra.mxu0 0.0
        %1576 = vmatprep.subr.mxu0 0.0
        %1577 = vmatpush1.msra.mxu0 0.0
        %1578 = vmatprep.subr.mxu0 0.0
        %1579 = vmatpush1.msra.mxu0 0.0
        %1580 = vmatprep.subr.mxu0 0.0
        %1581 = vmatpush1.msra.mxu0 0.0
        %1582 = vmatprep.subr.mxu0 0.0
        %1583 = vmatpush1.msra.mxu0 0.0
        %1584 = vmatprep.subr.mxu0 0.0
        %1585 = vmatpush1.msra.mxu0 0.0
        %1586 = vmatprep.subr.mxu0 0.0
        %1587 = vmatpush1.msra.mxu0 0.0
        %1588 = vmatprep.subr.mxu0 0.0
        %1589 = vmatpush1.msra.mxu0 0.0
        %1590 = vmatprep.mubr.f32.mxu0 0.0
        %1591 = vmatmul.mubr.f32.gmra.mrb[0].mxu0 %v1521
        %v1592 = vpop.f32.mrb[0].mxu0
        %v1593 = vadd.f32 0.0, %v1592
        %v1594 = vpop.f32.mrb[0].mxu0
        %1595 = vmatprep.mubr.f32.mxu0 0.0
        %1596 = vmatmul.mubr.f32.gmra.mrb[0].mxu0 %v1524
        %v1597 = vpop.f32.mrb[0].mxu0
        %v1598 = vadd.f32 0.0, %v1597
        %v1599 = vpop.f32.mrb[0].mxu0
        %1600 = vdwg.mxu0
        %v1602 = vsel %vm562, %v1593, 0
        %v1605 = vsel %vm562, %v1598, 0
        %1607 = vmatprep.subr.mxu0 0.0
        %1608 = vmatpush1.msra.mxu0 %v555
        %1609 = vmatprep.subr.mxu0 0.0
        %1610 = vmatpush1.msra.mxu0 0.0
        %1611 = vmatprep.subr.mxu0 0.0
        %1612 = vmatpush1.msra.mxu0 0.0
        %1613 = vmatprep.subr.mxu0 0.0
        %1614 = vmatpush1.msra.mxu0 0.0
        %1615 = vmatprep.subr.mxu0 0.0
        %1616 = vmatpush1.msra.mxu0 0.0
        %1617 = vmatprep.subr.mxu0 0.0
        %1618 = vmatpush1.msra.mxu0 0.0
        %1619 = vmatprep.subr.mxu0 0.0
        %1620 = vmatpush1.msra.mxu0 0.0
        %1621 = vmatprep.subr.mxu0 0.0
        %1622 = vmatpush1.msra.mxu0 0.0
        %1623 = vmatprep.subr.mxu0 0.0
        %1624 = vmatpush1.msra.mxu0 0.0
        %1625 = vmatprep.subr.mxu0 0.0
        %1626 = vmatpush1.msra.mxu0 0.0
        %1627 = vmatprep.subr.mxu0 0.0
        %1628 = vmatpush1.msra.mxu0 0.0
        %1629 = vmatprep.subr.mxu0 0.0
        %1630 = vmatpush1.msra.mxu0 0.0
        %1631 = vmatprep.subr.mxu0 0.0
        %1632 = vmatpush1.msra.mxu0 0.0
        %1633 = vmatprep.subr.mxu0 0.0
        %1634 = vmatpush1.msra.mxu0 0.0
        %1635 = vmatprep.subr.mxu0 0.0
        %1636 = vmatpush1.msra.mxu0 0.0
        %1637 = vmatprep.subr.mxu0 0.0
        %1638 = vmatpush1.msra.mxu0 0.0
        %1639 = vmatprep.subr.mxu0 0.0
        %1640 = vmatpush1.msra.mxu0 0.0
        %1641 = vmatprep.subr.mxu0 0.0
        %1642 = vmatpush1.msra.mxu0 0.0
        %1643 = vmatprep.subr.mxu0 0.0
        %1644 = vmatpush1.msra.mxu0 0.0
        %1645 = vmatprep.subr.mxu0 0.0
        %1646 = vmatpush1.msra.mxu0 0.0
        %1647 = vmatprep.subr.mxu0 0.0
        %1648 = vmatpush1.msra.mxu0 0.0
        %1649 = vmatprep.subr.mxu0 0.0
        %1650 = vmatpush1.msra.mxu0 0.0
        %1651 = vmatprep.subr.mxu0 0.0
        %1652 = vmatpush1.msra.mxu0 0.0
        %1653 = vmatprep.subr.mxu0 0.0
        %1654 = vmatpush1.msra.mxu0 0.0
        %1655 = vmatprep.subr.mxu0 0.0
        %1656 = vmatpush1.msra.mxu0 0.0
        %1657 = vmatprep.subr.mxu0 0.0
        %1658 = vmatpush1.msra.mxu0 0.0
        %1659 = vmatprep.subr.mxu0 0.0
        %1660 = vmatpush1.msra.mxu0 0.0
        %1661 = vmatprep.subr.mxu0 0.0
        %1662 = vmatpush1.msra.mxu0 0.0
        %1663 = vmatprep.subr.mxu0 0.0
        %1664 = vmatpush1.msra.mxu0 0.0
        %1665 = vmatprep.subr.mxu0 0.0
        %1666 = vmatpush1.msra.mxu0 0.0
        %1667 = vmatprep.subr.mxu0 0.0
        %1668 = vmatpush1.msra.mxu0 0.0
        %1669 = vmatprep.subr.mxu0 0.0
        %1670 = vmatpush1.msra.mxu0 0.0
        %1671 = vmatprep.mubr.f32.mxu0 0.0
        %1672 = vmatmul.mubr.f32.gmra.mrb[0].mxu0 %v1602
        %v1673 = vpop.f32.mrb[0].mxu0
        %v1674 = vadd.f32 0.0, %v1673
        %v1675 = vpop.f32.mrb[0].mxu0
        %1676 = vmatprep.mubr.f32.mxu0 0.0
        %1677 = vmatmul.mubr.f32.gmra.mrb[0].mxu0 %v1605
        %v1678 = vpop.f32.mrb[0].mxu0
        %v1679 = vadd.f32 0.0, %v1678
        %v1680 = vpop.f32.mrb[0].mxu0
        %1681 = vdwg.mxu0
        %v1682 = vadd.f32 %v1399, %v1674
        %v1683 = vadd.f32 %v1400, %v1679
        %v1684 = vld [vmem:[%s5] sm:$0x1]
        %v1686 = vlaneseq
        %v1687 = vshrl.u32 %v1686, 7
        %v1688 = vsub.s32 0, %v1687
        %v1689 = vrot.slane %v1684, %v1688
        %v1691 = vadd.f32 %v1682, %v1689
        %v1692 = vadd.f32 %v1683, %v1689
        %v1693 = vadd.f32 %v1691, %v455
        %v1694 = vadd.f32 %v1692, %v456
        %v1695 = vld [vmem:[%s6] sm:$0x1]
        %v1696 = vld [vmem:[%s7] sm:$0x1]
        %v1697 = vsel %vm470, %v1693, 0.0
        %1698 = vadd.xlane.f32.xlu0 %v1697
        %v1699 = vpop.xlane.xlu0 %1698
        %v1700 = vsel %vm470, %v1694, 0.0
        %1701 = vadd.xlane.f32.xlu0 %v1700
        %v1702 = vpop.xlane.xlu0 %1701
        %v1703 = vrcp.pop 32.0
        %v1704 = vmul.f32 %v1699, %v1703
        %v1705 = vmul.f32 %v1702, %v1703
        %v1706 = vsub.f32 %v1693, %v1704
        %v1707 = vsub.f32 %v1694, %v1705
        %v1708 = vmul.f32 %v1706, %v1706
        %v1709 = vmul.f32 %v1707, %v1707
        %v1710 = vsel %vm470, %v1708, 0.0
        %1711 = vadd.xlane.f32.xlu0 %v1710
        %v1712 = vpop.xlane.xlu0 %1711
        %v1713 = vsel %vm470, %v1709, 0.0
        %1714 = vadd.xlane.f32.xlu0 %v1713
        %v1715 = vpop.xlane.xlu0 %1714
        %v1716 = vmul.f32 %v1712, %v1703
        %v1717 = vmul.f32 %v1715, %v1703
        %v1718 = vadd.f32 %v1716, 1e-12
        %v1719 = vadd.f32 %v1717, 1e-12
        %v1720 = vrsqrt.pop %v1718
        %v1721 = vrsqrt.pop %v1719
        %v1722 = vmul.f32 %v1706, %v1720
        %v1723 = vmul.f32 %v1707, %v1721
        %v1725 = vlaneseq
        %v1726 = vshrl.u32 %v1725, 7
        %v1727 = vsub.s32 0, %v1726
        %v1728 = vrot.slane %v1695, %v1727
        %v1730 = vmul.f32 %v1722, %v1728
        %v1731 = vmul.f32 %v1723, %v1728
        %v1733 = vlaneseq
        %v1734 = vshrl.u32 %v1733, 7
        %v1735 = vsub.s32 0, %v1734
        %v1736 = vrot.slane %v1696, %v1735
        %v1738 = vadd.f32 %v1730, %v1736
        %v1739 = vadd.f32 %v1731, %v1736
        %v1740 = vld [vmem:[%s8] sm:$0xff]
        %v1741 = vld [vmem:[%s8 + $0x8] sm:$0xff]
        %v1742 = vld [vmem:[%s8 + $0x10] sm:$0xff]
        %v1743 = vld [vmem:[%s8 + $0x18] sm:$0xff]
        %v1744 = vld [vmem:[%s9] sm:$0x1]
        %v1746 = vlaneseq
        %v1747 = vshrl.u32 %v1746, 7
        %v1748 = vsub.s32 0, %v1747
        %v1749 = vrot.slane %v1744, %v1748
        %v1752 = vsel %vm470, %v1738, 0
        %v1755 = vsel %vm470, %v1739, 0
        %1757 = vmatprep.subr.mxu0 0.0
        %1758 = vmatpush1.msra.mxu0 %v1740
        %1759 = vmatprep.subr.mxu0 0.0
        %1760 = vmatpush1.msra.mxu0 %v1741
        %1761 = vmatprep.subr.mxu0 0.0
        %1762 = vmatpush1.msra.mxu0 %v1742
        %1763 = vmatprep.subr.mxu0 0.0
        %1764 = vmatpush1.msra.mxu0 %v1743
        %1765 = vmatprep.subr.mxu0 0.0
        %1766 = vmatpush1.msra.mxu0 0.0
        %1767 = vmatprep.subr.mxu0 0.0
        %1768 = vmatpush1.msra.mxu0 0.0
        %1769 = vmatprep.subr.mxu0 0.0
        %1770 = vmatpush1.msra.mxu0 0.0
        %1771 = vmatprep.subr.mxu0 0.0
        %1772 = vmatpush1.msra.mxu0 0.0
        %1773 = vmatprep.subr.mxu0 0.0
        %1774 = vmatpush1.msra.mxu0 0.0
        %1775 = vmatprep.subr.mxu0 0.0
        %1776 = vmatpush1.msra.mxu0 0.0
        %1777 = vmatprep.subr.mxu0 0.0
        %1778 = vmatpush1.msra.mxu0 0.0
        %1779 = vmatprep.subr.mxu0 0.0
        %1780 = vmatpush1.msra.mxu0 0.0
        %1781 = vmatprep.subr.mxu0 0.0
        %1782 = vmatpush1.msra.mxu0 0.0
        %1783 = vmatprep.subr.mxu0 0.0
        %1784 = vmatpush1.msra.mxu0 0.0
        %1785 = vmatprep.subr.mxu0 0.0
        %1786 = vmatpush1.msra.mxu0 0.0
        %1787 = vmatprep.subr.mxu0 0.0
        %1788 = vmatpush1.msra.mxu0 0.0
        %1789 = vmatprep.subr.mxu0 0.0
        %1790 = vmatpush1.msra.mxu0 0.0
        %1791 = vmatprep.subr.mxu0 0.0
        %1792 = vmatpush1.msra.mxu0 0.0
        %1793 = vmatprep.subr.mxu0 0.0
        %1794 = vmatpush1.msra.mxu0 0.0
        %1795 = vmatprep.subr.mxu0 0.0
        %1796 = vmatpush1.msra.mxu0 0.0
        %1797 = vmatprep.subr.mxu0 0.0
        %1798 = vmatpush1.msra.mxu0 0.0
        %1799 = vmatprep.subr.mxu0 0.0
        %1800 = vmatpush1.msra.mxu0 0.0
        %1801 = vmatprep.subr.mxu0 0.0
        %1802 = vmatpush1.msra.mxu0 0.0
        %1803 = vmatprep.subr.mxu0 0.0
        %1804 = vmatpush1.msra.mxu0 0.0
        %1805 = vmatprep.subr.mxu0 0.0
        %1806 = vmatpush1.msra.mxu0 0.0
        %1807 = vmatprep.subr.mxu0 0.0
        %1808 = vmatpush1.msra.mxu0 0.0
        %1809 = vmatprep.subr.mxu0 0.0
        %1810 = vmatpush1.msra.mxu0 0.0
        %1811 = vmatprep.subr.mxu0 0.0
        %1812 = vmatpush1.msra.mxu0 0.0
        %1813 = vmatprep.subr.mxu0 0.0
        %1814 = vmatpush1.msra.mxu0 0.0
        %1815 = vmatprep.subr.mxu0 0.0
        %1816 = vmatpush1.msra.mxu0 0.0
        %1817 = vmatprep.subr.mxu0 0.0
        %1818 = vmatpush1.msra.mxu0 0.0
        %1819 = vmatprep.subr.mxu0 0.0
        %1820 = vmatpush1.msra.mxu0 0.0
        %1821 = vmatprep.mubr.f32.mxu0 0.0
        %1822 = vmatmul.mubr.f32.gmra.mrb[0].mxu0 %v1752
        %v1823 = vpop.f32.mrb[0].mxu0
        %v1824 = vadd.f32 %v1749, %v1823
        %v1825 = vpop.f32.mrb[0].mxu0
        %1826 = vmatprep.mubr.f32.mxu0 0.0
        %1827 = vmatmul.mubr.f32.gmra.mrb[0].mxu0 %v1755
        %v1828 = vpop.f32.mrb[0].mxu0
        %v1829 = vadd.f32 %v1749, %v1828
        %v1830 = vpop.f32.mrb[0].mxu0
        %1831 = vdwg.mxu0
        %v1832 = vmul.f32 %v1824, 0.5
        %v1833 = vmul.f32 %v1829, 0.5
        %v1834 = vmul.f32 %v1824, 0.70710677
        %v1835 = vmul.f32 %v1829, 0.70710677
        %v1836 = verf.f32.pop %v1834
        %v1837 = verf.f32.pop %v1835
        %v1838 = vadd.f32 %v1836, 1.0
        %v1839 = vadd.f32 %v1837, 1.0
        %v1840 = vmul.f32 %v1832, %v1838
        %v1841 = vmul.f32 %v1833, %v1839
        %v1842 = vld [vmem:[%s10] sm:$0xff]
        %v1843 = vld [vmem:[%s10 + $0x8] sm:$0xff]
        %v1844 = vld [vmem:[%s10 + $0x10] sm:$0xff]
        %v1845 = vld [vmem:[%s10 + $0x18] sm:$0xff]
        %v1846 = vld [vmem:[%s10 + $0x20] sm:$0xff]
        %v1847 = vld [vmem:[%s10 + $0x28] sm:$0xff]
        %v1848 = vld [vmem:[%s10 + $0x30] sm:$0xff]
        %v1849 = vld [vmem:[%s10 + $0x38] sm:$0xff]
        %v1850 = vld [vmem:[%s11] sm:$0x1]
        %v1852 = vlaneseq
        %v1853 = vshrl.u32 %v1852, 7
        %v1854 = vsub.s32 0, %v1853
        %v1855 = vrot.slane %v1850, %v1854
        %vm1857 = vcmask 523264
        %v1859 = vsel %vm1857, %v1840, 0
        %v1862 = vsel %vm1857, %v1841, 0
        %1864 = vmatprep.subr.mxu0 0.0
        %1865 = vmatpush1.msra.mxu0 %v1842
        %1866 = vmatprep.subr.mxu0 0.0
        %1867 = vmatpush1.msra.mxu0 %v1843
        %1868 = vmatprep.subr.mxu0 0.0
        %1869 = vmatpush1.msra.mxu0 %v1844
        %1870 = vmatprep.subr.mxu0 0.0
        %1871 = vmatpush1.msra.mxu0 %v1845
        %1872 = vmatprep.subr.mxu0 0.0
        %1873 = vmatpush1.msra.mxu0 %v1846
        %1874 = vmatprep.subr.mxu0 0.0
        %1875 = vmatpush1.msra.mxu0 %v1847
        %1876 = vmatprep.subr.mxu0 0.0
        %1877 = vmatpush1.msra.mxu0 %v1848
        %1878 = vmatprep.subr.mxu0 0.0
        %1879 = vmatpush1.msra.mxu0 %v1849
        %1880 = vmatprep.subr.mxu0 0.0
        %1881 = vmatpush1.msra.mxu0 0.0
        %1882 = vmatprep.subr.mxu0 0.0
        %1883 = vmatpush1.msra.mxu0 0.0
        %1884 = vmatprep.subr.mxu0 0.0
        %1885 = vmatpush1.msra.mxu0 0.0
        %1886 = vmatprep.subr.mxu0 0.0
        %1887 = vmatpush1.msra.mxu0 0.0
        %1888 = vmatprep.subr.mxu0 0.0
        %1889 = vmatpush1.msra.mxu0 0.0
        %1890 = vmatprep.subr.mxu0 0.0
        %1891 = vmatpush1.msra.mxu0 0.0
        %1892 = vmatprep.subr.mxu0 0.0
        %1893 = vmatpush1.msra.mxu0 0.0
        %1894 = vmatprep.subr.mxu0 0.0
        %1895 = vmatpush1.msra.mxu0 0.0
        %1896 = vmatprep.subr.mxu0 0.0
        %1897 = vmatpush1.msra.mxu0 0.0
        %1898 = vmatprep.subr.mxu0 0.0
        %1899 = vmatpush1.msra.mxu0 0.0
        %1900 = vmatprep.subr.mxu0 0.0
        %1901 = vmatpush1.msra.mxu0 0.0
        %1902 = vmatprep.subr.mxu0 0.0
        %1903 = vmatpush1.msra.mxu0 0.0
        %1904 = vmatprep.subr.mxu0 0.0
        %1905 = vmatpush1.msra.mxu0 0.0
        %1906 = vmatprep.subr.mxu0 0.0
        %1907 = vmatpush1.msra.mxu0 0.0
        %1908 = vmatprep.subr.mxu0 0.0
        %1909 = vmatpush1.msra.mxu0 0.0
        %1910 = vmatprep.subr.mxu0 0.0
        %1911 = vmatpush1.msra.mxu0 0.0
        %1912 = vmatprep.subr.mxu0 0.0
        %1913 = vmatpush1.msra.mxu0 0.0
        %1914 = vmatprep.subr.mxu0 0.0
        %1915 = vmatpush1.msra.mxu0 0.0
        %1916 = vmatprep.subr.mxu0 0.0
        %1917 = vmatpush1.msra.mxu0 0.0
        %1918 = vmatprep.subr.mxu0 0.0
        %1919 = vmatpush1.msra.mxu0 0.0
        %1920 = vmatprep.subr.mxu0 0.0
        %1921 = vmatpush1.msra.mxu0 0.0
        %1922 = vmatprep.subr.mxu0 0.0
        %1923 = vmatpush1.msra.mxu0 0.0
        %1924 = vmatprep.subr.mxu0 0.0
        %1925 = vmatpush1.msra.mxu0 0.0
        %1926 = vmatprep.subr.mxu0 0.0
        %1927 = vmatpush1.msra.mxu0 0.0
        %1928 = vmatprep.mubr.f32.mxu0 0.0
        %1929 = vmatmul.mubr.f32.gmra.mrb[0].mxu0 %v1859
        %v1930 = vpop.f32.mrb[0].mxu0
        %v1931 = vadd.f32 %v1855, %v1930
        %v1932 = vpop.f32.mrb[0].mxu0
        %1933 = vmatprep.mubr.f32.mxu0 0.0
        %1934 = vmatmul.mubr.f32.gmra.mrb[0].mxu0 %v1862
        %v1935 = vpop.f32.mrb[0].mxu0
        %v1936 = vadd.f32 %v1855, %v1935
        %v1937 = vpop.f32.mrb[0].mxu0
        %1938 = vdwg.mxu0
        %v1939 = vadd.f32 %v1931, %v1738
        %v1940 = vadd.f32 %v1936, %v1739
        %v1941 = vld [vmem:[%s12] sm:$0x1]
        %v1942 = vld [vmem:[%s13] sm:$0x1]
        %v1943 = vsel %vm470, %v1939, 0.0
        %1944 = vadd.xlane.f32.xlu0 %v1943
        %v1945 = vpop.xlane.xlu0 %1944
        %v1946 = vsel %vm470, %v1940, 0.0
        %1947 = vadd.xlane.f32.xlu0 %v1946
        %v1948 = vpop.xlane.xlu0 %1947
        %v1949 = vmul.f32 %v1945, %v1703
        %v1950 = vmul.f32 %v1948, %v1703
        %v1951 = vsub.f32 %v1939, %v1949
        %v1952 = vsub.f32 %v1940, %v1950
        %v1953 = vmul.f32 %v1951, %v1951
        %v1954 = vmul.f32 %v1952, %v1952
        %v1955 = vsel %vm470, %v1953, 0.0
        %1956 = vadd.xlane.f32.xlu0 %v1955
        %v1957 = vpop.xlane.xlu0 %1956
        %v1958 = vsel %vm470, %v1954, 0.0
        %1959 = vadd.xlane.f32.xlu0 %v1958
        %v1960 = vpop.xlane.xlu0 %1959
        %v1961 = vmul.f32 %v1957, %v1703
        %v1962 = vmul.f32 %v1960, %v1703
        %v1963 = vadd.f32 %v1961, 1e-12
        %v1964 = vadd.f32 %v1962, 1e-12
        %v1965 = vrsqrt.pop %v1963
        %v1966 = vrsqrt.pop %v1964
        %v1967 = vmul.f32 %v1951, %v1965
        %v1968 = vmul.f32 %v1952, %v1966
        %v1970 = vlaneseq
        %v1971 = vshrl.u32 %v1970, 7
        %v1972 = vsub.s32 0, %v1971
        %v1973 = vrot.slane %v1941, %v1972
        %v1975 = vmul.f32 %v1967, %v1973
        %v1976 = vmul.f32 %v1968, %v1973
        %v1978 = vlaneseq
        %v1979 = vshrl.u32 %v1978, 7
        %v1980 = vsub.s32 0, %v1979
        %v1981 = vrot.slane %v1942, %v1980
        %v1983 = vadd.f32 %v1975, %v1981
        %v1984 = vadd.f32 %v1976, %v1981
        %1985 = vst.msk [vmem:[#allocation2] sm:$0xff] %vm470, %v1983
        %1986 = vst.msk [vmem:[#allocation2 + $0x8] sm:$0xff] %vm470, %v1984
        %1987 = vst.msk [vmem:[%s445] sm:$0xff] %vm470, %v1983
        %1988 = vst.msk [vmem:[%s445 + $0x8] sm:$0xff] %vm470, %v1984
        %s1989 = sand.u32 %s330, 1
        %s1990 = scalar_lea.sflag [#allocation4], %s1989
        %s1991 = sand.u32 %s330, 1
        %s1992 = smul.addr %s1991, 16
        %s1993 = scalar_lea.vmem [#allocation3], %s1992
        // Predicated region
        $region81: #{_benchmark_call.1} parent=75 // pred_check
          %p1994 = pneg %p340
        $region82: #{_benchmark_call.1} parent=75 // pred_check_branch
          %1996 = sbr.rel (%p1994) target = $region84
        $region83: #{_benchmark_call.1} parent=75 // pred_region
          %s1998 = ssub.s32 256, 256
          %1999 = vsyncadd %s1990, %s1998
          %s2000 = smul.addr %s28, 2
          %s2001 = smul.addr %s2000, 128
          %s2002 = scalar_lea.hbm %s14, %s2001
          %s2003 = sshll.u32 %s1993, 4
          %s2004 = int_to_ptr.vmem [resolvable:$true] %s2003
          %2009 = dma.vmem_to_hbm [thread:$0]  %s2004, 256, %s2002, %s1990, 128, 128, 8
        $region84: #{_benchmark_call.1} parent=75 // pred_fallthru
          _
      $region76: #{_benchmark_call.1} parent=5 // pred_fallthru
        _
      %p2010 = scmp.le.s32.totalorder 2, %s23
      // Predicated region
      $region85: #{_benchmark_call.1} parent=5 // pred_check
        %p2011 = pneg %p2010
      $region86: #{_benchmark_call.1} parent=5 // pred_check_branch
        %2013 = sbr.rel (%p2011) target = $region88
      $region87: #{_benchmark_call.1} parent=5 // pred_region
        %s2014 = ssub.s32 %s23, 2
        // Predicated region
        $region89: #{_benchmark_call.1} parent=87 // pred_check
          %p2015 = pneg %p346
        $region90: #{_benchmark_call.1} parent=87 // pred_check_branch
          %2017 = sbr.rel (%p2015) target = $region92
        $region91: #{_benchmark_call.1} parent=87 // pred_region
          %s2018 = sand.u32 %s331, 1
          %s2019 = scalar_lea.sflag [#allocation4], %s2018
          %s2020 = sand.u32 %s331, 1
          %s2021 = smul.addr %s2020, 16
          %s2022 = scalar_lea.vmem [#allocation3], %s2021
          %2023 = dma.done %s2019, 256
        $region92: #{_benchmark_call.1} parent=87 // pred_fallthru
          _
      $region88: #{_benchmark_call.1} parent=5 // pred_fallthru
        _
    $region6: #{_benchmark_call.1} parent=1 // loop_footer
      %s27 = sadd.s32 1, %s23
    $region7: #{_benchmark_call.1} parent=1 // loop_footer_branch
      %22 = sbr.rel target = $region3
    $region8: #{_benchmark_call.1} parent=1 // loop_exit
      _
    %2024 = vsyncpa [#allocation4], 1
    %s2025 = scalar_lea.sflag [#allocation4], 1
    %2026 = vsyncpa %s2025, 1

</llo_original>
